<compile_context>
chip_gen: v7x
topology: tpu7x:2x2x1
jax: 0.10.0
libtpu: 0.0.40
codegen_flags: <defaults>
</compile_context>

<pallas_src>
import functools

import jax
import jax.numpy as jnp
import numpy as np
from jax.experimental import pallas as pl
from jax.experimental.pallas import tpu as pltpu


def _round_up(x, m):
    return ((x + m - 1) // m) * m


def conv2d_groups_batchnorm(x_nchw, w_oihw, gamma, beta, *, groups=4, eps=1e-5):
    """Forward of M: grouped 3x3 / stride-2 / pad-1 conv (no bias) + BN (train)."""
    n, c, h, w = x_nchw.shape
    c_out, cg_in, kh, kw = w_oihw.shape
    stride, pad = 2, 1
    assert kh == 3 and kw == 3, "kernel specialised to 3x3, stride 2, pad 1"
    assert c % groups == 0 and c_out % groups == 0 and cg_in == c // groups
    cg_out = c_out // groups

    ho = (h + 2 * pad - kh) // stride + 1
    wo = (w + 2 * pad - kw) // stride + 1
    hp = _round_up(h + 2 * pad, 2)                  # even padded height
    wp = _round_up(w + 2 * pad, 2)                  # even padded width
    hh, wh = hp // 2, wp // 2                       # parity-plane extents
    assert wh == wo + 1 and hh >= ho + 1

    cgi = _round_up(cg_in, 128)                     # lane-dense K per tap
    cgo = _round_up(cg_out, 128)                    # lane-dense output channels
    wq = wo + 1                                     # output width padded to wh
    mq = ho * wq                                    # rows / image (incl. 1 junk col)
    nmq = n * mq
    m_valid = n * ho * wo
    plane_sz = hh * wh
    rows = n * 4 * plane_sz                         # flat parity rows per group
    k_all = kh * kw * cgi                           # fused contraction dim

    # Whole per-group problem is VMEM-resident in one grid step.
    step_bytes = rows * cgi * 2 + k_all * cgo * 2 + nmq * cgo * 4 + nmq * k_all * 2
    assert step_bytes < 20 * 1024 * 1024, "per-group working set too big; tile rows"

    # ---- glue: layout only (NHWC bf16, pad, stride-2 parity split), no dup ----
    xg = jnp.transpose(x_nchw, (0, 2, 3, 1)).astype(jnp.bfloat16)        # NHWC
    xg = xg.reshape(n, h, w, groups, cg_in)
    xg = jnp.pad(xg, ((0, 0), (pad, hp - h - pad), (pad, wp - w - pad),
                      (0, 0), (0, cgi - cg_in)))                          # (N,Hp,Wp,G,cgi)
    xg = xg.reshape(n, hh, 2, wh, 2, groups, cgi)
    planes = jnp.transpose(xg, (5, 0, 2, 4, 1, 3, 6))                     # (G,N,pr,pc,hh,wh,cgi)
    planes = planes.reshape(groups, rows, cgi)                            # bf16

    # weights (Cout, cg_in, 3, 3) -> (G, 9*cgi, cgo) bf16, tap-major rows.
    wg = w_oihw.reshape(groups, cg_out, cg_in, kh, kw)
    wg = jnp.transpose(wg, (0, 3, 4, 2, 1))                               # (G,dh,dw,ci,co)
    wg = jnp.pad(wg, ((0, 0), (0, 0), (0, 0), (0, cgi - cg_in), (0, cgo - cg_out)))
    wg = wg.reshape(groups, k_all, cgo).astype(jnp.bfloat16)

    gamma_g = jnp.pad(gamma.astype(jnp.float32).reshape(groups, 1, cg_out),
                      ((0, 0), (0, 0), (0, cgo - cg_out)))
    beta_g = jnp.pad(beta.astype(jnp.float32).reshape(groups, 1, cg_out),
                     ((0, 0), (0, 0), (0, cgo - cg_out)))

    inv_count = 1.0 / float(m_valid)

    def kernel(p_ref, w_ref, g_ref, b_ref, o_ref):
        # Assemble the (nmq, 9*cgi) slab in VMEM: each tap is a contiguous
        # statically-offset row slice of the resident parity planes.
        pieces = []
        for img in range(n):
            taps = []
            for dh in range(3):
                for dw in range(3):
                    par = (dh % 2) * 2 + (dw % 2)
                    off = (img * 4 + par) * plane_sz + (dh // 2) * wh + (dw // 2)
                    # Tap (dh,dw)=(2,2) may read one row past its plane (into the
                    # next plane, never past the array); it only feeds the junk
                    # column wo==wq-1, which is masked from stats & sliced off.
                    taps.append(p_ref[0, off:off + mq, :])
            pieces.append(jnp.concatenate(taps, axis=1))
        lhs = pieces[0] if n == 1 else jnp.concatenate(pieces, axis=0)    # (nmq,k_all)

        acc = jnp.dot(lhs, w_ref[0], preferred_element_type=jnp.float32)  # (nmq,cgo)

        # BatchNorm batch statistics over valid positions only (centred, f32).
        col = jax.lax.broadcasted_iota(jnp.int32, (nmq, cgo), 0) % wq
        valid = col < wo
        mean = jnp.sum(jnp.where(valid, acc, 0.0), axis=0, keepdims=True) * inv_count
        diff = jnp.where(valid, acc - mean, 0.0)
        var = jnp.sum(diff * diff, axis=0, keepdims=True) * inv_count
        inv_std = jax.lax.rsqrt(var + eps)
        scale = g_ref[0] * inv_std                                        # (1,cgo)
        bias = b_ref[0] - mean * scale
        o_ref[...] = acc * scale + bias

    out2d = pl.pallas_call(
        kernel,
        out_shape=jax.ShapeDtypeStruct((nmq, groups * cgo), jnp.float32),
        grid=(groups,),
        in_specs=[
            pl.BlockSpec((1, rows, cgi), lambda g: (g, 0, 0)),
            pl.BlockSpec((1, k_all, cgo), lambda g: (g, 0, 0)),
            pl.BlockSpec((1, 1, cgo), lambda g: (g, 0, 0)),
            pl.BlockSpec((1, 1, cgo), lambda g: (g, 0, 0)),
        ],
        out_specs=pl.BlockSpec((nmq, cgo), lambda g: (0, g)),
        compiler_params=pltpu.CompilerParams(
            dimension_semantics=("parallel",),
            vmem_limit_bytes=32 * 1024 * 1024),
    )(planes, wg, gamma_g, beta_g)

    # ---- glue: drop junk column / channel padding, back to NCHW ----
    out = out2d.reshape(n, ho, wq, groups, cgo)[:, :, :wo, :, :cg_out]
    out = out.reshape(n, ho, wo, c_out)
    return jnp.transpose(out, (0, 3, 1, 2)).astype(x_nchw.dtype)


def reference_forward(x_nchw, w_oihw, gamma, beta, *, groups=4, eps=1e-5):
    y = jax.lax.conv_general_dilated(
        x_nchw, w_oihw, window_strides=(2, 2), padding=((1, 1), (1, 1)),
        dimension_numbers=("NCHW", "OIHW", "NCHW"),
        feature_group_count=groups)
    mean = jnp.mean(y, axis=(0, 2, 3), keepdims=True)
    var = jnp.mean(jnp.square(y - mean), axis=(0, 2, 3), keepdims=True)
    yn = (y - mean) * jax.lax.rsqrt(var + eps)
    return yn * gamma.reshape(1, -1, 1, 1) + beta.reshape(1, -1, 1, 1)


if __name__ == "__main__":
    # Small shapes consistent with the module: groups=4, stride-2 3x3 conv.
    # H=W=14 -> Ho=Wo=7 (exercises the junk-column masking and multi-batch).
    N, C, H, W = 2, 32, 14, 14
    GROUPS = 4

    key = jax.random.PRNGKey(0)
    kx, kwt, kg, kb = jax.random.split(key, 4)
    x = jax.random.normal(kx, (N, C, H, W), dtype=jnp.float32)
    wconv = jax.random.normal(kwt, (C, C // GROUPS, 3, 3), dtype=jnp.float32) * 0.1
    gamma = 1.0 + 0.1 * jax.random.normal(kg, (C,), dtype=jnp.float32)
    beta = 0.1 * jax.random.normal(kb, (C,), dtype=jnp.float32)

    fwd = jax.jit(functools.partial(conv2d_groups_batchnorm, groups=GROUPS))
    out = jax.block_until_ready(fwd(x, wconv, gamma, beta))
    ref = jax.block_until_ready(
        reference_forward(x, wconv, gamma, beta, groups=GROUPS))

    assert out.shape == ref.shape, (out.shape, ref.shape)
    # bf16 matmul operands (f32 accumulation, f32 centred BN stats).
    np.testing.assert_allclose(np.asarray(out), np.asarray(ref),
                               rtol=2e-2, atol=2e-2)
    print("KERNEL_OK")
</pallas_src>

<mosaic_0001>
module attributes {stable_mosaic.version = 11 : i64} {
  func.func @kernel(%arg0: i32, %arg1: memref<1x512x128xbf16, #tpu.memory_space<vmem>>, %arg2: memref<1x1152x128xbf16, #tpu.memory_space<vmem>>, %arg3: memref<1x1x128xf32, #tpu.memory_space<vmem>>, %arg4: memref<1x1x128xf32, #tpu.memory_space<vmem>>, %arg5: memref<112x128xf32, #tpu.memory_space<vmem>>) attributes {dimension_semantics = [#tpu.dimension_semantics<parallel>], iteration_bounds = array<i64: 4>, scalar_prefetch = 0 : i64, scratch_operands = 0 : i64, tpu.core_type = #tpu.core_type<tc>, window_params = [{transform_indices = @transform_0, window_bounds = array<i64: 1, 512, 128>}, {transform_indices = @transform_1, window_bounds = array<i64: 1, 1152, 128>}, {transform_indices = @transform_2, window_bounds = array<i64: 1, 1, 128>}, {transform_indices = @transform_3, window_bounds = array<i64: 1, 1, 128>}, {transform_indices = @transform_4, window_bounds = array<i64: 112, 128>}]} {
    %c0 = arith.constant 0 : index
    %c0_0 = arith.constant 0 : index
    %c0_1 = arith.constant 0 : index
    %0 = vector.load %arg1[%c0, %c0_0, %c0_1] : memref<1x512x128xbf16, #tpu.memory_space<vmem>>, vector<1x56x128xbf16>
    %1 = vector.shape_cast %0 : vector<1x56x128xbf16> to vector<56x128xbf16>
    %c0_2 = arith.constant 0 : index
    %c64 = arith.constant 64 : index
    %c0_3 = arith.constant 0 : index
    %2 = vector.load %arg1[%c0_2, %c64, %c0_3] : memref<1x512x128xbf16, #tpu.memory_space<vmem>>, vector<1x56x128xbf16>
    %3 = vector.shape_cast %2 : vector<1x56x128xbf16> to vector<56x128xbf16>
    %c0_4 = arith.constant 0 : index
    %c1 = arith.constant 1 : index
    %c0_5 = arith.constant 0 : index
    %4 = vector.load %arg1[%c0_4, %c1, %c0_5] : memref<1x512x128xbf16, #tpu.memory_space<vmem>>, vector<1x56x128xbf16>
    %5 = vector.shape_cast %4 : vector<1x56x128xbf16> to vector<56x128xbf16>
    %c0_6 = arith.constant 0 : index
    %c128 = arith.constant 128 : index
    %c0_7 = arith.constant 0 : index
    %6 = vector.load %arg1[%c0_6, %c128, %c0_7] : memref<1x512x128xbf16, #tpu.memory_space<vmem>>, vector<1x56x128xbf16>
    %7 = vector.shape_cast %6 : vector<1x56x128xbf16> to vector<56x128xbf16>
    %c0_8 = arith.constant 0 : index
    %c192 = arith.constant 192 : index
    %c0_9 = arith.constant 0 : index
    %8 = vector.load %arg1[%c0_8, %c192, %c0_9] : memref<1x512x128xbf16, #tpu.memory_space<vmem>>, vector<1x56x128xbf16>
    %9 = vector.shape_cast %8 : vector<1x56x128xbf16> to vector<56x128xbf16>
    %c0_10 = arith.constant 0 : index
    %c129 = arith.constant 129 : index
    %c0_11 = arith.constant 0 : index
    %10 = vector.load %arg1[%c0_10, %c129, %c0_11] : memref<1x512x128xbf16, #tpu.memory_space<vmem>>, vector<1x56x128xbf16>
    %11 = vector.shape_cast %10 : vector<1x56x128xbf16> to vector<56x128xbf16>
    %c0_12 = arith.constant 0 : index
    %c8 = arith.constant 8 : index
    %c0_13 = arith.constant 0 : index
    %12 = vector.load %arg1[%c0_12, %c8, %c0_13] : memref<1x512x128xbf16, #tpu.memory_space<vmem>>, vector<1x56x128xbf16>
    %13 = vector.shape_cast %12 : vector<1x56x128xbf16> to vector<56x128xbf16>
    %c0_14 = arith.constant 0 : index
    %c72 = arith.constant 72 : index
    %c0_15 = arith.constant 0 : index
    %14 = vector.load %arg1[%c0_14, %c72, %c0_15] : memref<1x512x128xbf16, #tpu.memory_space<vmem>>, vector<1x56x128xbf16>
    %15 = vector.shape_cast %14 : vector<1x56x128xbf16> to vector<56x128xbf16>
    %c0_16 = arith.constant 0 : index
    %c9 = arith.constant 9 : index
    %c0_17 = arith.constant 0 : index
    %16 = vector.load %arg1[%c0_16, %c9, %c0_17] : memref<1x512x128xbf16, #tpu.memory_space<vmem>>, vector<1x56x128xbf16>
    %17 = vector.shape_cast %16 : vector<1x56x128xbf16> to vector<56x128xbf16>
    %18 = tpu.concatenate %1, %3, %5, %7, %9, %11, %13, %15, %17 in 1 : vector<56x128xbf16>, vector<56x128xbf16>, vector<56x128xbf16>, vector<56x128xbf16>, vector<56x128xbf16>, vector<56x128xbf16>, vector<56x128xbf16>, vector<56x128xbf16>, vector<56x128xbf16> -> vector<56x1152xbf16>
    %c0_18 = arith.constant 0 : index
    %c256 = arith.constant 256 : index
    %c0_19 = arith.constant 0 : index
    %19 = vector.load %arg1[%c0_18, %c256, %c0_19] : memref<1x512x128xbf16, #tpu.memory_space<vmem>>, vector<1x56x128xbf16>
    %20 = vector.shape_cast %19 : vector<1x56x128xbf16> to vector<56x128xbf16>
    %c0_20 = arith.constant 0 : index
    %c320 = arith.constant 320 : index
    %c0_21 = arith.constant 0 : index
    %21 = vector.load %arg1[%c0_20, %c320, %c0_21] : memref<1x512x128xbf16, #tpu.memory_space<vmem>>, vector<1x56x128xbf16>
    %22 = vector.shape_cast %21 : vector<1x56x128xbf16> to vector<56x128xbf16>
    %c0_22 = arith.constant 0 : index
    %c257 = arith.constant 257 : index
    %c0_23 = arith.constant 0 : index
    %23 = vector.load %arg1[%c0_22, %c257, %c0_23] : memref<1x512x128xbf16, #tpu.memory_space<vmem>>, vector<1x56x128xbf16>
    %24 = vector.shape_cast %23 : vector<1x56x128xbf16> to vector<56x128xbf16>
    %c0_24 = arith.constant 0 : index
    %c384 = arith.constant 384 : index
    %c0_25 = arith.constant 0 : index
    %25 = vector.load %arg1[%c0_24, %c384, %c0_25] : memref<1x512x128xbf16, #tpu.memory_space<vmem>>, vector<1x56x128xbf16>
    %26 = vector.shape_cast %25 : vector<1x56x128xbf16> to vector<56x128xbf16>
    %c0_26 = arith.constant 0 : index
    %c448 = arith.constant 448 : index
    %c0_27 = arith.constant 0 : index
    %27 = vector.load %arg1[%c0_26, %c448, %c0_27] : memref<1x512x128xbf16, #tpu.memory_space<vmem>>, vector<1x56x128xbf16>
    %28 = vector.shape_cast %27 : vector<1x56x128xbf16> to vector<56x128xbf16>
    %c0_28 = arith.constant 0 : index
    %c385 = arith.constant 385 : index
    %c0_29 = arith.constant 0 : index
    %29 = vector.load %arg1[%c0_28, %c385, %c0_29] : memref<1x512x128xbf16, #tpu.memory_space<vmem>>, vector<1x56x128xbf16>
    %30 = vector.shape_cast %29 : vector<1x56x128xbf16> to vector<56x128xbf16>
    %c0_30 = arith.constant 0 : index
    %c264 = arith.constant 264 : index
    %c0_31 = arith.constant 0 : index
    %31 = vector.load %arg1[%c0_30, %c264, %c0_31] : memref<1x512x128xbf16, #tpu.memory_space<vmem>>, vector<1x56x128xbf16>
    %32 = vector.shape_cast %31 : vector<1x56x128xbf16> to vector<56x128xbf16>
    %c0_32 = arith.constant 0 : index
    %c328 = arith.constant 328 : index
    %c0_33 = arith.constant 0 : index
    %33 = vector.load %arg1[%c0_32, %c328, %c0_33] : memref<1x512x128xbf16, #tpu.memory_space<vmem>>, vector<1x56x128xbf16>
    %34 = vector.shape_cast %33 : vector<1x56x128xbf16> to vector<56x128xbf16>
    %c0_34 = arith.constant 0 : index
    %c265 = arith.constant 265 : index
    %c0_35 = arith.constant 0 : index
    %35 = vector.load %arg1[%c0_34, %c265, %c0_35] : memref<1x512x128xbf16, #tpu.memory_space<vmem>>, vector<1x56x128xbf16>
    %36 = vector.shape_cast %35 : vector<1x56x128xbf16> to vector<56x128xbf16>
    %37 = tpu.concatenate %20, %22, %24, %26, %28, %30, %32, %34, %36 in 1 : vector<56x128xbf16>, vector<56x128xbf16>, vector<56x128xbf16>, vector<56x128xbf16>, vector<56x128xbf16>, vector<56x128xbf16>, vector<56x128xbf16>, vector<56x128xbf16>, vector<56x128xbf16> -> vector<56x1152xbf16>
    %38 = tpu.concatenate %18, %37 in 0 : vector<56x1152xbf16>, vector<56x1152xbf16> -> vector<112x1152xbf16>
    %c0_36 = arith.constant 0 : index
    %c0_37 = arith.constant 0 : index
    %c0_38 = arith.constant 0 : index
    %39 = vector.load %arg2[%c0_36, %c0_37, %c0_38] : memref<1x1152x128xbf16, #tpu.memory_space<vmem>>, vector<1x1152x128xbf16>
    %40 = vector.shape_cast %39 : vector<1x1152x128xbf16> to vector<1152x128xbf16>
    %cst = arith.constant dense<0.000000e+00> : vector<112x128xf32>
    %41 = tpu.matmul %38, %40, %cst {dimension_numbers = #tpu.dot_dimension_numbers<[1], [0], [0], [1], [0, 0, 1, 1], [], []>} : vector<112x1152xbf16>, vector<1152x128xbf16>, vector<112x128xf32> -> vector<112x128xf32>
    %42 = tpu.iota {dimensions = array<i32: 0>} : vector<112x128xi32>
    %c8_i32 = arith.constant 8 : i32
    %c0_i32 = arith.constant 0 : i32
    %43 = arith.cmpi eq, %c8_i32, %c0_i32 : i32
    %c1_i32 = arith.constant 1 : i32
    %44 = arith.select %43, %c1_i32, %c8_i32 : i32
    %45 = vector.broadcast %44 : i32 to vector<112x128xi32>
    %46 = arith.remsi %42, %45 : vector<112x128xi32>
    %c0_i32_39 = arith.constant 0 : i32
    %47 = vector.broadcast %c0_i32_39 : i32 to vector<112x128xi32>
    %48 = arith.cmpi ne, %46, %47 : vector<112x128xi32>
    %c0_i32_40 = arith.constant 0 : i32
    %49 = vector.broadcast %c0_i32_40 : i32 to vector<112x128xi32>
    %50 = arith.cmpi slt, %46, %49 : vector<112x128xi32>
    %c0_i32_41 = arith.constant 0 : i32
    %51 = arith.cmpi slt, %44, %c0_i32_41 : i32
    %52 = vector.broadcast %51 : i1 to vector<112x128xi1>
    %53 = vector.broadcast %52 : vector<112x128xi1> to vector<112x128xi1>
    %54 = arith.xori %50, %53 : vector<112x128xi1>
    %55 = arith.andi %54, %48 : vector<112x128xi1>
    %56 = vector.broadcast %44 : i32 to vector<112x128xi32>
    %57 = arith.addi %46, %56 : vector<112x128xi32>
    %58 = arith.select %55, %57, %46 : vector<112x128xi1>, vector<112x128xi32>
    %c7_i32 = arith.constant 7 : i32
    %59 = vector.broadcast %c7_i32 : i32 to vector<112x128xi32>
    %60 = arith.cmpi slt, %58, %59 : vector<112x128xi32>
    %cst_42 = arith.constant 0.000000e+00 : f32
    %61 = vector.broadcast %cst_42 : f32 to vector<112x128xf32>
    %62 = arith.select %60, %41, %61 : vector<112x128xi1>, vector<112x128xf32>
    %cst_43 = arith.constant dense<0.000000e+00> : vector<128xf32>
    %63 = vector.multi_reduction <add>, %62, %cst_43 [0] : vector<112x128xf32> to vector<128xf32>
    %64 = vector.shape_cast %63 : vector<128xf32> to vector<1x128xf32>
    %cst_44 = arith.constant 0.0102040814 : f32
    %65 = vector.broadcast %cst_44 : f32 to vector<1x128xf32>
    %66 = arith.mulf %64, %65 : vector<1x128xf32>
    %67 = vector.broadcast %66 : vector<1x128xf32> to vector<112x128xf32>
    %68 = arith.subf %41, %67 : vector<112x128xf32>
    %cst_45 = arith.constant 0.000000e+00 : f32
    %69 = vector.broadcast %cst_45 : f32 to vector<112x128xf32>
    %70 = arith.select %60, %68, %69 : vector<112x128xi1>, vector<112x128xf32>
    %71 = arith.mulf %70, %70 : vector<112x128xf32>
    %cst_46 = arith.constant dense<0.000000e+00> : vector<128xf32>
    %72 = vector.multi_reduction <add>, %71, %cst_46 [0] : vector<112x128xf32> to vector<128xf32>
    %73 = vector.shape_cast %72 : vector<128xf32> to vector<1x128xf32>
    %cst_47 = arith.constant 0.0102040814 : f32
    %74 = vector.broadcast %cst_47 : f32 to vector<1x128xf32>
    %75 = arith.mulf %73, %74 : vector<1x128xf32>
    %cst_48 = arith.constant 9.99999974E-6 : f32
    %76 = vector.broadcast %cst_48 : f32 to vector<1x128xf32>
    %77 = arith.addf %75, %76 : vector<1x128xf32>
    %78 = math.rsqrt %77 : vector<1x128xf32>
    %c0_49 = arith.constant 0 : index
    %c0_50 = arith.constant 0 : index
    %c0_51 = arith.constant 0 : index
    %79 = vector.load %arg3[%c0_49, %c0_50, %c0_51] : memref<1x1x128xf32, #tpu.memory_space<vmem>>, vector<1x1x128xf32>
    %80 = vector.shape_cast %79 : vector<1x1x128xf32> to vector<1x128xf32>
    %81 = arith.mulf %80, %78 : vector<1x128xf32>
    %c0_52 = arith.constant 0 : index
    %c0_53 = arith.constant 0 : index
    %c0_54 = arith.constant 0 : index
    %82 = vector.load %arg4[%c0_52, %c0_53, %c0_54] : memref<1x1x128xf32, #tpu.memory_space<vmem>>, vector<1x1x128xf32>
    %83 = vector.shape_cast %82 : vector<1x1x128xf32> to vector<1x128xf32>
    %84 = arith.mulf %66, %81 : vector<1x128xf32>
    %85 = arith.subf %83, %84 : vector<1x128xf32>
    %86 = vector.broadcast %81 : vector<1x128xf32> to vector<112x128xf32>
    %87 = arith.mulf %41, %86 : vector<112x128xf32>
    %88 = vector.broadcast %85 : vector<1x128xf32> to vector<112x128xf32>
    %89 = arith.addf %87, %88 : vector<112x128xf32>
    %c0_55 = arith.constant 0 : index
    %c0_56 = arith.constant 0 : index
    %90 = vector.load %arg5[%c0_55, %c0_56] : memref<112x128xf32, #tpu.memory_space<vmem>>, vector<112x128xf32>
    tpu.vector_store %arg5[%c0_55, %c0_56], %89 {strides = array<i32>} : memref<112x128xf32, #tpu.memory_space<vmem>>, vector<112x128xf32>,
    return
  }
  func.func @transform_0(%arg0: i32) -> (i32, i32, i32) {
    %c0_i32 = arith.constant 0 : i32
    %c0_i32_0 = arith.constant 0 : i32
    %c0_i32_1 = arith.constant 0 : i32
    return %arg0, %c0_i32, %c0_i32_0 : i32, i32, i32
  }
  func.func @transform_1(%arg0: i32) -> (i32, i32, i32) {
    %c0_i32 = arith.constant 0 : i32
    %c0_i32_0 = arith.constant 0 : i32
    %c0_i32_1 = arith.constant 0 : i32
    return %arg0, %c0_i32, %c0_i32_0 : i32, i32, i32
  }
  func.func @transform_2(%arg0: i32) -> (i32, i32, i32) {
    %c0_i32 = arith.constant 0 : i32
    %c0_i32_0 = arith.constant 0 : i32
    %c0_i32_1 = arith.constant 0 : i32
    return %arg0, %c0_i32, %c0_i32_0 : i32, i32, i32
  }
  func.func @transform_3(%arg0: i32) -> (i32, i32, i32) {
    %c0_i32 = arith.constant 0 : i32
    %c0_i32_0 = arith.constant 0 : i32
    %c0_i32_1 = arith.constant 0 : i32
    return %arg0, %c0_i32, %c0_i32_0 : i32, i32, i32
  }
  func.func @transform_4(%arg0: i32) -> (i32, i32) {
    %c0_i32 = arith.constant 0 : i32
    %c0_i32_0 = arith.constant 0 : i32
    return %c0_i32, %arg0 : i32, i32
  }
}

</mosaic_0001>

<llo_original>
// kernel: conv2d_groups_batchnorm.1
$region0: #{conv2d_groups_batchnorm.1}
  #allocation0 [shape = 'u32[]', space=smem, size = 0x4, offset = 0x4, fixed_abs, tag = 'smem constant byte address 0x4 - core index']
  #allocation1 [shape = 'u32[144,128]{1,0:T(1,128)}', space=vmem, size = 0x12000, scoped, tag = 'internal scratch']
  %s0 = inlined_call_operand.vmem [shape: bf16[4,512,128], index: 0, kind: input, shape index: {}]
  %s1 = inlined_call_operand.vmem [shape: bf16[4,1152,128], index: 1, kind: input, shape index: {}]
  %s2 = inlined_call_operand.vmem [shape: f32[4,1,128], index: 2, kind: input, shape index: {}]
  %s3 = inlined_call_operand.vmem [shape: f32[4,1,128], index: 3, kind: input, shape index: {}]
  %s4 = inlined_call_operand.vmem [shape: f32[112,512], index: 4, kind: output, shape index: {}]
  %s5 = sld [smem:[#allocation0]]
  $region83: #{conv2d_groups_batchnorm.1} parent=0
    _
  %s7 = ssub.s32 1, %s5
  %s8 = scalar_select 0, %s7, %s5
  $region1: #{conv2d_groups_batchnorm.1} parent=0
    #allocation2 [shape = 'u8[114688]{0}', space=vmem, size = 0x1c000, scoped, tag = 'output window, operand 0']
    loop: start=0, step=1, limit=6
    $region2: #{conv2d_groups_batchnorm.1} parent=1 // loop_pre_header
      _
    $region3: #{conv2d_groups_batchnorm.1} parent=1 // loop_header
      %s10 = sphi 0, %s14
      %p11 = scmp.ge.s32.totalorder %s10, 6
      %s20 = sphi 0, %s22
      %s23 = sphi 0, %s20
      %s24 = sphi 0, %s23
      %s40 = sphi 0, %s24
      %s46 = sphi 0, %s48
      %s49 = sphi 0, %s46
      %s50 = sphi 0, %s49
      %s66 = sphi 0, %s50
      %s72 = sphi 0, %s74
      %s75 = sphi 0, %s72
      %s76 = sphi 0, %s75
      %s92 = sphi 0, %s76
      %s98 = sphi 0, %s100
      %s101 = sphi 0, %s98
      %s102 = sphi 0, %s101
      %s118 = sphi 0, %s102
      %s124 = sphi 0, %s126
      %s127 = sphi 0, %s124
      %s128 = sphi 0, %s127
      %s144 = sphi 0, %s128
    $region4: #{conv2d_groups_batchnorm.1} parent=1 // loop_header_branch
      %13 = sbr.rel (%p11) target = $region8
    $region5: #{conv2d_groups_batchnorm.1} parent=1 // loop_body
      %s15 = ssub.s32 %s10, 1
      %s16 = ssub.s32 %s10, 2
      %s17 = sadd.s32 %s10, 1
      %s18 = ssub.s32 %s10, %s17
      %p19 = scmp.eq.s32.totalorder %s18, 0
      %s21 = sadd.s32 %s20, 1
      %s22 = scalar_select %p19, %s20, %s21
      %p25 = pneg %p19
      %p26 = scmp.eq.s32.totalorder %s10, 3
      %p27 = por %p25, %p26
      %p28 = scmp.ne.s32.totalorder %s20, %s23
      %p29 = scmp.eq.s32.totalorder %s10, 0
      %p30 = por %p28, %p29
      %p31 = scmp.ne.s32.totalorder %s20, %s23
      %p32 = scmp.eq.s32.totalorder %s15, 3
      %p33 = por %p31, %p32
      %p34 = scmp.ne.s32.totalorder %s23, %s24
      %p35 = scmp.eq.s32.totalorder %s15, 0
      %p36 = por %p34, %p35
      %p37 = scmp.ne.s32.totalorder %s23, %s24
      %p38 = scmp.eq.s32.totalorder %s16, 3
      %p39 = por %p37, %p38
      %p41 = scmp.ne.s32.totalorder %s24, %s40
      %p42 = scmp.eq.s32.totalorder %s16, 0
      %p43 = por %p41, %p42
      %s44 = ssub.s32 %s10, %s17
      %p45 = scmp.eq.s32.totalorder %s44, 0
      %s47 = sadd.s32 %s46, 1
      %s48 = scalar_select %p45, %s46, %s47
      %p51 = pneg %p45
      %p52 = scmp.eq.s32.totalorder %s10, 3
      %p53 = por %p51, %p52
      %p54 = scmp.ne.s32.totalorder %s46, %s49
      %p55 = scmp.eq.s32.totalorder %s10, 0
      %p56 = por %p54, %p55
      %p57 = scmp.ne.s32.totalorder %s46, %s49
      %p58 = scmp.eq.s32.totalorder %s15, 3
      %p59 = por %p57, %p58
      %p60 = scmp.ne.s32.totalorder %s49, %s50
      %p61 = scmp.eq.s32.totalorder %s15, 0
      %p62 = por %p60, %p61
      %p63 = scmp.ne.s32.totalorder %s49, %s50
      %p64 = scmp.eq.s32.totalorder %s16, 3
      %p65 = por %p63, %p64
      %p67 = scmp.ne.s32.totalorder %s50, %s66
      %p68 = scmp.eq.s32.totalorder %s16, 0
      %p69 = por %p67, %p68
      %s70 = ssub.s32 %s10, %s17
      %p71 = scmp.eq.s32.totalorder %s70, 0
      %s73 = sadd.s32 %s72, 1
      %s74 = scalar_select %p71, %s72, %s73
      %p77 = pneg %p71
      %p78 = scmp.eq.s32.totalorder %s10, 3
      %p79 = por %p77, %p78
      %p80 = scmp.ne.s32.totalorder %s72, %s75
      %p81 = scmp.eq.s32.totalorder %s10, 0
      %p82 = por %p80, %p81
      %p83 = scmp.ne.s32.totalorder %s72, %s75
      %p84 = scmp.eq.s32.totalorder %s15, 3
      %p85 = por %p83, %p84
      %p86 = scmp.ne.s32.totalorder %s75, %s76
      %p87 = scmp.eq.s32.totalorder %s15, 0
      %p88 = por %p86, %p87
      %p89 = scmp.ne.s32.totalorder %s75, %s76
      %p90 = scmp.eq.s32.totalorder %s16, 3
      %p91 = por %p89, %p90
      %p93 = scmp.ne.s32.totalorder %s76, %s92
      %p94 = scmp.eq.s32.totalorder %s16, 0
      %p95 = por %p93, %p94
      %s96 = ssub.s32 %s10, %s17
      %p97 = scmp.eq.s32.totalorder %s96, 0
      %s99 = sadd.s32 %s98, 1
      %s100 = scalar_select %p97, %s98, %s99
      %p103 = pneg %p97
      %p104 = scmp.eq.s32.totalorder %s10, 3
      %p105 = por %p103, %p104
      %p106 = scmp.ne.s32.totalorder %s98, %s101
      %p107 = scmp.eq.s32.totalorder %s10, 0
      %p108 = por %p106, %p107
      %p109 = scmp.ne.s32.totalorder %s98, %s101
      %p110 = scmp.eq.s32.totalorder %s15, 3
      %p111 = por %p109, %p110
      %p112 = scmp.ne.s32.totalorder %s101, %s102
      %p113 = scmp.eq.s32.totalorder %s15, 0
      %p114 = por %p112, %p113
      %p115 = scmp.ne.s32.totalorder %s101, %s102
      %p116 = scmp.eq.s32.totalorder %s16, 3
      %p117 = por %p115, %p116
      %p119 = scmp.ne.s32.totalorder %s102, %s118
      %p120 = scmp.eq.s32.totalorder %s16, 0
      %p121 = por %p119, %p120
      %s122 = ssub.s32 %s10, %s17
      %p123 = scmp.eq.s32.totalorder %s122, 0
      %s125 = sadd.s32 %s124, 1
      %s126 = scalar_select %p123, %s124, %s125
      %p129 = pneg %p123
      %p130 = scmp.eq.s32.totalorder %s10, 3
      %p131 = por %p129, %p130
      %p132 = scmp.ne.s32.totalorder %s124, %s127
      %p133 = scmp.eq.s32.totalorder %s10, 0
      %p134 = por %p132, %p133
      %p135 = scmp.ne.s32.totalorder %s124, %s127
      %p136 = scmp.eq.s32.totalorder %s15, 3
      %p137 = por %p135, %p136
      %p138 = scmp.ne.s32.totalorder %s127, %s128
      %p139 = scmp.eq.s32.totalorder %s15, 0
      %p140 = por %p138, %p139
      %p141 = scmp.ne.s32.totalorder %s127, %s128
      %p142 = scmp.eq.s32.totalorder %s16, 3
      %p143 = por %p141, %p142
      %p145 = scmp.ne.s32.totalorder %s128, %s144
      %p146 = scmp.eq.s32.totalorder %s16, 0
      %p147 = por %p145, %p146
      %p148 = scmp.le.s32.totalorder 1, %s10
      %p149 = scmp.lt.s32.totalorder %s10, 5
      %p150 = pnand %p148, %p149
      %p151 = pneg %p150
      // Predicated region
      $region9: #{conv2d_groups_batchnorm.1} parent=5 // pred_check
        _
      $region10: #{conv2d_groups_batchnorm.1} parent=5 // pred_check_branch
        %153 = sbr.rel (%p150) target = $region12
      $region11: #{conv2d_groups_batchnorm.1} parent=5 // pred_region
        %s154 = ssub.s32 %s10, 1
      $region12: #{conv2d_groups_batchnorm.1} parent=5 // pred_fallthru
        _
      %p155 = scmp.lt.s32.totalorder %s10, 4
      // Predicated region
      $region13: #{conv2d_groups_batchnorm.1} parent=5 // pred_check
        %p156 = pneg %p155
      $region14: #{conv2d_groups_batchnorm.1} parent=5 // pred_check_branch
        %158 = sbr.rel (%p156) target = $region16
      $region15: #{conv2d_groups_batchnorm.1} parent=5 // pred_region
        // Predicated region
        $region17: #{conv2d_groups_batchnorm.1} parent=15 // pred_check
          %p159 = pneg %p30
        $region18: #{conv2d_groups_batchnorm.1} parent=15 // pred_check_branch
          %161 = sbr.rel (%p159) target = $region20
        $region19: #{conv2d_groups_batchnorm.1} parent=15 // pred_region
          %p162 = scmp.lt.s32.totalorder %s10, 3
          %s163 = scalar_select %p162, %s10, 3
          %s164 = smul.addr %s163, 64
          %s165 = smul.addr %s164, 4
          %s166 = scalar_lea.vmem %s0, %s165
        $region20: #{conv2d_groups_batchnorm.1} parent=15 // pred_fallthru
          _
        // Predicated region
        $region21: #{conv2d_groups_batchnorm.1} parent=15 // pred_check
          %p167 = pneg %p56
        $region22: #{conv2d_groups_batchnorm.1} parent=15 // pred_check_branch
          %169 = sbr.rel (%p167) target = $region24
        $region23: #{conv2d_groups_batchnorm.1} parent=15 // pred_region
          %p170 = scmp.lt.s32.totalorder %s10, 3
          %s171 = scalar_select %p170, %s10, 3
          %s172 = smul.addr %s171, 144
          %s173 = smul.addr %s172, 4
          %s174 = scalar_lea.vmem %s1, %s173
        $region24: #{conv2d_groups_batchnorm.1} parent=15 // pred_fallthru
          _
        // Predicated region
        $region25: #{conv2d_groups_batchnorm.1} parent=15 // pred_check
          %p175 = pneg %p82
        $region26: #{conv2d_groups_batchnorm.1} parent=15 // pred_check_branch
          %177 = sbr.rel (%p175) target = $region28
        $region27: #{conv2d_groups_batchnorm.1} parent=15 // pred_region
          %p178 = scmp.lt.s32.totalorder %s10, 3
          %s179 = scalar_select %p178, %s10, 3
          %s180 = scalar_lea.vmem %s2, %s179
        $region28: #{conv2d_groups_batchnorm.1} parent=15 // pred_fallthru
          _
        // Predicated region
        $region29: #{conv2d_groups_batchnorm.1} parent=15 // pred_check
          %p181 = pneg %p108
        $region30: #{conv2d_groups_batchnorm.1} parent=15 // pred_check_branch
          %183 = sbr.rel (%p181) target = $region32
        $region31: #{conv2d_groups_batchnorm.1} parent=15 // pred_region
          %p184 = scmp.lt.s32.totalorder %s10, 3
          %s185 = scalar_select %p184, %s10, 3
          %s186 = scalar_lea.vmem %s3, %s185
        $region32: #{conv2d_groups_batchnorm.1} parent=15 // pred_fallthru
          _
      $region16: #{conv2d_groups_batchnorm.1} parent=5 // pred_fallthru
        _
      %p187 = scmp.le.s32.totalorder 1, %s10
      %p188 = scmp.lt.s32.totalorder %s10, 5
      %p189 = pnand %p187, %p188
      %p190 = pneg %p189
      // Predicated region
      $region33: #{conv2d_groups_batchnorm.1} parent=5 // pred_check
        _
      $region34: #{conv2d_groups_batchnorm.1} parent=5 // pred_check_branch
        %192 = sbr.rel (%p189) target = $region36
      $region35: #{conv2d_groups_batchnorm.1} parent=5 // pred_region
        %s193 = ssub.s32 %s10, 1
        %p194 = scmp.lt.s32.totalorder %s15, 3
        %s195 = scalar_select %p194, %s15, 3
        %s196 = smul.addr %s195, 64
        %s197 = smul.addr %s196, 4
        %s198 = scalar_lea.vmem %s0, %s197
        %p199 = pneg %p36
        %p200 = pneg %p33
        %p201 = scmp.lt.s32.totalorder %s15, 3
        %s202 = scalar_select %p201, %s15, 3
        %s203 = smul.addr %s202, 144
        %s204 = smul.addr %s203, 4
        %s205 = scalar_lea.vmem %s1, %s204
        %p206 = pneg %p62
        %p207 = pneg %p59
        %p208 = scmp.lt.s32.totalorder %s15, 3
        %s209 = scalar_select %p208, %s15, 3
        %s210 = scalar_lea.vmem %s2, %s209
        %p211 = pneg %p88
        %p212 = pneg %p85
        %p213 = scmp.lt.s32.totalorder %s15, 3
        %s214 = scalar_select %p213, %s15, 3
        %s215 = scalar_lea.vmem %s3, %s214
        %p216 = pneg %p114
        %p217 = pneg %p111
        %p218 = pneg %p140
        %p219 = pneg %p137
        %s220 = sand.u32 %s127, 1
        %s221 = sand.u32 %s127, 1
        %s222 = smul.addr %s221, 112
        %s223 = scalar_lea.vmem [#allocation2], %s222
        %p224 = scmp.lt.s32.totalorder %s15, 3
        %s225 = scalar_select %p224, %s15, 3
        %s226 = smul.addr %s225, 64
        %s227 = smul.addr %s226, 4
        %s228 = scalar_lea.vmem %s0, %s227
        %p229 = scmp.lt.s32.totalorder %s15, 3
        %s230 = scalar_select %p229, %s15, 3
        %s231 = smul.addr %s230, 144
        %s232 = smul.addr %s231, 4
        %s233 = scalar_lea.vmem %s1, %s232
        %p234 = scmp.lt.s32.totalorder %s15, 3
        %s235 = scalar_select %p234, %s15, 3
        %s236 = scalar_lea.vmem %s2, %s235
        %p237 = scmp.lt.s32.totalorder %s15, 3
        %s238 = scalar_select %p237, %s15, 3
        %s239 = scalar_lea.vmem %s3, %s238
        %v241 = vld [vmem:[%s228] sm:$0xf]
        %v242 = vld [vmem:[%s228 + $0x4] sm:$0xf]
        %v243 = vld [vmem:[%s228 + $0x8] sm:$0xf]
        %v244 = vld [vmem:[%s228 + $0xc] sm:$0xf]
        %v245 = vld [vmem:[%s228 + $0x10] sm:$0xf]
        %v246 = vld [vmem:[%s228 + $0x14] sm:$0xf]
        %v247 = vld [vmem:[%s228 + $0x18] sm:$0xf]
        %v248 = vld [vmem:[%s228 + $0x20] sm:$0xf]
        %v249 = vld [vmem:[%s228 + $0x24] sm:$0xf]
        %v250 = vld [vmem:[%s228 + $0x28] sm:$0xf]
        %v251 = vld [vmem:[%s228 + $0x2c] sm:$0xf]
        %v252 = vld [vmem:[%s228 + $0x30] sm:$0xf]
        %v253 = vld [vmem:[%s228 + $0x34] sm:$0xf]
        %v254 = vld [vmem:[%s228 + $0x38] sm:$0xf]
        %v255 = vld [vmem:[%s228 + $0x1c] sm:$0x1]
        %v256 = vld [vmem:[%s228 + $0x40] sm:$0xf]
        %v257 = vld [vmem:[%s228 + $0x44] sm:$0xf]
        %v258 = vld [vmem:[%s228 + $0x48] sm:$0xf]
        %v259 = vld [vmem:[%s228 + $0x4c] sm:$0xf]
        %v260 = vld [vmem:[%s228 + $0x50] sm:$0xf]
        %v261 = vld [vmem:[%s228 + $0x54] sm:$0xf]
        %v262 = vld [vmem:[%s228 + $0x58] sm:$0xf]
        %v263 = vld [vmem:[%s228 + $0x60] sm:$0xf]
        %v264 = vld [vmem:[%s228 + $0x64] sm:$0xf]
        %v265 = vld [vmem:[%s228 + $0x68] sm:$0xf]
        %v266 = vld [vmem:[%s228 + $0x6c] sm:$0xf]
        %v267 = vld [vmem:[%s228 + $0x70] sm:$0xf]
        %v268 = vld [vmem:[%s228 + $0x74] sm:$0xf]
        %v269 = vld [vmem:[%s228 + $0x78] sm:$0xf]
        %v270 = vld [vmem:[%s228 + $0x5c] sm:$0x1]
        %v271 = vld [vmem:[%s228 + $0x1c] sm:$0xf]
        %v272 = vld [vmem:[%s228 + $0x3c] sm:$0xf]
        %v273 = vld [vmem:[%s228 + $0x20] sm:$0x1]
        %v281 = vunpack.c.l.b16 %v241
        %v282 = vunpack.c.l.b16 %v242
        %v283 = vunpack.c.l.b16 %v243
        %v284 = vunpack.c.l.b16 %v244
        %v285 = vunpack.c.l.b16 %v245
        %v286 = vunpack.c.l.b16 %v246
        %v287 = vunpack.c.l.b16 %v247
        %v288 = vpack.c.b16 %v282, %v281
        %v289 = vpack.c.b16 %v284, %v283
        %v290 = vpack.c.b16 %v286, %v285
        %v291 = vpack.c.b16 %v287, %v287
        %v302 = vunpack.c.l.b16 %v248
        %v303 = vunpack.c.l.b16 %v249
        %v304 = vunpack.c.l.b16 %v250
        %v305 = vunpack.c.l.b16 %v251
        %v306 = vunpack.c.l.b16 %v252
        %v307 = vunpack.c.l.b16 %v253
        %v308 = vunpack.c.l.b16 %v254
        %v309 = vpack.c.b16 %v303, %v302
        %v310 = vpack.c.b16 %v305, %v304
        %v311 = vpack.c.b16 %v307, %v306
        %v312 = vpack.c.b16 %v308, %v308
        %v317 = vunpack.c.l.b16 %v255
        %v318 = vpack.c.b16 %v317, %v287
        %vm319 = vsmask.f32 7424
        %v321 = vshrl.u32 %v288, 16
        %v323 = vshll.u32 %v288, 16
        %v325 = vrot.slane %v323, 1
        %v326 = vor.u32 %v321, %v325
        %v328 = vshll.u32 %v289, 16
        %v330 = vrot.slane %v328, 1
        %v331 = vsel %vm319, %v326, %v330
        %v332 = vshrl.u32 %v289, 16
        %v334 = vor.u32 %v332, %v330
        %v336 = vshll.u32 %v290, 16
        %v338 = vrot.slane %v336, 1
        %v339 = vsel %vm319, %v334, %v338
        %v340 = vshrl.u32 %v290, 16
        %v342 = vor.u32 %v340, %v338
        %v344 = vshll.u32 %v318, 16
        %v346 = vrot.slane %v344, 1
        %v347 = vsel %vm319, %v342, %v346
        %v348 = vshrl.u32 %v318, 16
        %v350 = vor.u32 %v348, %v346
        %v361 = vunpack.c.l.b16 %v256
        %v362 = vunpack.c.l.b16 %v257
        %v363 = vunpack.c.l.b16 %v258
        %v364 = vunpack.c.l.b16 %v259
        %v365 = vunpack.c.l.b16 %v260
        %v366 = vunpack.c.l.b16 %v261
        %v367 = vunpack.c.l.b16 %v262
        %v368 = vpack.c.b16 %v362, %v361
        %v369 = vpack.c.b16 %v364, %v363
        %v370 = vpack.c.b16 %v366, %v365
        %v371 = vpack.c.b16 %v367, %v367
        %v382 = vunpack.c.l.b16 %v263
        %v383 = vunpack.c.l.b16 %v264
        %v384 = vunpack.c.l.b16 %v265
        %v385 = vunpack.c.l.b16 %v266
        %v386 = vunpack.c.l.b16 %v267
        %v387 = vunpack.c.l.b16 %v268
        %v388 = vunpack.c.l.b16 %v269
        %v389 = vpack.c.b16 %v383, %v382
        %v390 = vpack.c.b16 %v385, %v384
        %v391 = vpack.c.b16 %v387, %v386
        %v392 = vpack.c.b16 %v388, %v388
        %v397 = vunpack.c.l.b16 %v270
        %v398 = vpack.c.b16 %v397, %v367
        %v400 = vshrl.u32 %v368, 16
        %v402 = vshll.u32 %v368, 16
        %v404 = vrot.slane %v402, 1
        %v405 = vor.u32 %v400, %v404
        %v407 = vshll.u32 %v369, 16
        %v409 = vrot.slane %v407, 1
        %v410 = vsel %vm319, %v405, %v409
        %v411 = vshrl.u32 %v369, 16
        %v413 = vor.u32 %v411, %v409
        %v415 = vshll.u32 %v370, 16
        %v417 = vrot.slane %v415, 1
        %v418 = vsel %vm319, %v413, %v417
        %v419 = vshrl.u32 %v370, 16
        %v421 = vor.u32 %v419, %v417
        %v423 = vshll.u32 %v398, 16
        %v425 = vrot.slane %v423, 1
        %v426 = vsel %vm319, %v421, %v425
        %v427 = vshrl.u32 %v398, 16
        %v429 = vor.u32 %v427, %v425
        %v434 = vunpack.c.l.b16 %v271
        %v435 = vpack.c.b16 %v283, %v282
        %v436 = vpack.c.b16 %v285, %v284
        %v437 = vpack.c.b16 %v287, %v286
        %v438 = vpack.c.b16 %v434, %v434
        %v443 = vunpack.c.l.b16 %v272
        %v444 = vpack.c.b16 %v304, %v303
        %v445 = vpack.c.b16 %v306, %v305
        %v446 = vpack.c.b16 %v308, %v307
        %v447 = vpack.c.b16 %v443, %v443
        %v452 = vunpack.c.l.b16 %v273
        %v453 = vpack.c.b16 %v452, %v434
        %v455 = vshrl.u32 %v435, 16
        %v457 = vshll.u32 %v435, 16
        %v459 = vrot.slane %v457, 1
        %v460 = vor.u32 %v455, %v459
        %v462 = vshll.u32 %v436, 16
        %v464 = vrot.slane %v462, 1
        %v465 = vsel %vm319, %v460, %v464
        %v466 = vshrl.u32 %v436, 16
        %v468 = vor.u32 %v466, %v464
        %v470 = vshll.u32 %v437, 16
        %v472 = vrot.slane %v470, 1
        %v473 = vsel %vm319, %v468, %v472
        %v474 = vshrl.u32 %v437, 16
        %v476 = vor.u32 %v474, %v472
        %v478 = vshll.u32 %v453, 16
        %v480 = vrot.slane %v478, 1
        %v481 = vsel %vm319, %v476, %v480
        %v482 = vshrl.u32 %v453, 16
        %v484 = vor.u32 %v482, %v480
        %v488 = vld [vmem:[%s228 + $0x80] sm:$0xf]
        %v489 = vld [vmem:[%s228 + $0x84] sm:$0xf]
        %v490 = vld [vmem:[%s228 + $0x88] sm:$0xf]
        %v491 = vld [vmem:[%s228 + $0x8c] sm:$0xf]
        %v492 = vld [vmem:[%s228 + $0x90] sm:$0xf]
        %v493 = vld [vmem:[%s228 + $0x94] sm:$0xf]
        %v494 = vld [vmem:[%s228 + $0x98] sm:$0xf]
        %v495 = vld [vmem:[%s228 + $0xa0] sm:$0xf]
        %v496 = vld [vmem:[%s228 + $0xa4] sm:$0xf]
        %v497 = vld [vmem:[%s228 + $0xa8] sm:$0xf]
        %v498 = vld [vmem:[%s228 + $0xac] sm:$0xf]
        %v499 = vld [vmem:[%s228 + $0xb0] sm:$0xf]
        %v500 = vld [vmem:[%s228 + $0xb4] sm:$0xf]
        %v501 = vld [vmem:[%s228 + $0xb8] sm:$0xf]
        %v502 = vld [vmem:[%s228 + $0x9c] sm:$0x1]
        %v503 = vld [vmem:[%s228 + $0xc0] sm:$0xf]
        %v504 = vld [vmem:[%s228 + $0xc4] sm:$0xf]
        %v505 = vld [vmem:[%s228 + $0xc8] sm:$0xf]
        %v506 = vld [vmem:[%s228 + $0xcc] sm:$0xf]
        %v507 = vld [vmem:[%s228 + $0xd0] sm:$0xf]
        %v508 = vld [vmem:[%s228 + $0xd4] sm:$0xf]
        %v509 = vld [vmem:[%s228 + $0xd8] sm:$0xf]
        %v510 = vld [vmem:[%s228 + $0xe0] sm:$0xf]
        %v511 = vld [vmem:[%s228 + $0xe4] sm:$0xf]
        %v512 = vld [vmem:[%s228 + $0xe8] sm:$0xf]
        %v513 = vld [vmem:[%s228 + $0xec] sm:$0xf]
        %v514 = vld [vmem:[%s228 + $0xf0] sm:$0xf]
        %v515 = vld [vmem:[%s228 + $0xf4] sm:$0xf]
        %v516 = vld [vmem:[%s228 + $0xf8] sm:$0xf]
        %v517 = vld [vmem:[%s228 + $0xdc] sm:$0x1]
        %v518 = vld [vmem:[%s228 + $0x9c] sm:$0xf]
        %v519 = vld [vmem:[%s228 + $0xbc] sm:$0xf]
        %v520 = vld [vmem:[%s228 + $0xa0] sm:$0x1]
        %v528 = vunpack.c.l.b16 %v488
        %v529 = vunpack.c.l.b16 %v489
        %v530 = vunpack.c.l.b16 %v490
        %v531 = vunpack.c.l.b16 %v491
        %v532 = vunpack.c.l.b16 %v492
        %v533 = vunpack.c.l.b16 %v493
        %v534 = vunpack.c.l.b16 %v494
        %v535 = vpack.c.b16 %v529, %v528
        %v536 = vpack.c.b16 %v531, %v530
        %v537 = vpack.c.b16 %v533, %v532
        %v538 = vpack.c.b16 %v534, %v534
        %v546 = vunpack.c.l.b16 %v495
        %v547 = vunpack.c.l.b16 %v496
        %v548 = vunpack.c.l.b16 %v497
        %v549 = vunpack.c.l.b16 %v498
        %v550 = vunpack.c.l.b16 %v499
        %v551 = vunpack.c.l.b16 %v500
        %v552 = vunpack.c.l.b16 %v501
        %v553 = vpack.c.b16 %v547, %v546
        %v554 = vpack.c.b16 %v549, %v548
        %v555 = vpack.c.b16 %v551, %v550
        %v556 = vpack.c.b16 %v552, %v552
        %v558 = vunpack.c.l.b16 %v502
        %v559 = vpack.c.b16 %v558, %v534
        %v561 = vshrl.u32 %v535, 16
        %v563 = vshll.u32 %v535, 16
        %v565 = vrot.slane %v563, 1
        %v566 = vor.u32 %v561, %v565
        %v568 = vshll.u32 %v536, 16
        %v570 = vrot.slane %v568, 1
        %v571 = vsel %vm319, %v566, %v570
        %v572 = vshrl.u32 %v536, 16
        %v574 = vor.u32 %v572, %v570
        %v576 = vshll.u32 %v537, 16
        %v578 = vrot.slane %v576, 1
        %v579 = vsel %vm319, %v574, %v578
        %v580 = vshrl.u32 %v537, 16
        %v582 = vor.u32 %v580, %v578
        %v584 = vshll.u32 %v559, 16
        %v586 = vrot.slane %v584, 1
        %v587 = vsel %vm319, %v582, %v586
        %v588 = vshrl.u32 %v559, 16
        %v590 = vor.u32 %v588, %v586
        %v598 = vunpack.c.l.b16 %v503
        %v599 = vunpack.c.l.b16 %v504
        %v600 = vunpack.c.l.b16 %v505
        %v601 = vunpack.c.l.b16 %v506
        %v602 = vunpack.c.l.b16 %v507
        %v603 = vunpack.c.l.b16 %v508
        %v604 = vunpack.c.l.b16 %v509
        %v605 = vpack.c.b16 %v599, %v598
        %v606 = vpack.c.b16 %v601, %v600
        %v607 = vpack.c.b16 %v603, %v602
        %v608 = vpack.c.b16 %v604, %v604
        %v616 = vunpack.c.l.b16 %v510
        %v617 = vunpack.c.l.b16 %v511
        %v618 = vunpack.c.l.b16 %v512
        %v619 = vunpack.c.l.b16 %v513
        %v620 = vunpack.c.l.b16 %v514
        %v621 = vunpack.c.l.b16 %v515
        %v622 = vunpack.c.l.b16 %v516
        %v623 = vpack.c.b16 %v617, %v616
        %v624 = vpack.c.b16 %v619, %v618
        %v625 = vpack.c.b16 %v621, %v620
        %v626 = vpack.c.b16 %v622, %v622
        %v628 = vunpack.c.l.b16 %v517
        %v629 = vpack.c.b16 %v628, %v604
        %v631 = vshrl.u32 %v605, 16
        %v633 = vshll.u32 %v605, 16
        %v635 = vrot.slane %v633, 1
        %v636 = vor.u32 %v631, %v635
        %v638 = vshll.u32 %v606, 16
        %v640 = vrot.slane %v638, 1
        %v641 = vsel %vm319, %v636, %v640
        %v642 = vshrl.u32 %v606, 16
        %v644 = vor.u32 %v642, %v640
        %v646 = vshll.u32 %v607, 16
        %v648 = vrot.slane %v646, 1
        %v649 = vsel %vm319, %v644, %v648
        %v650 = vshrl.u32 %v607, 16
        %v652 = vor.u32 %v650, %v648
        %v654 = vshll.u32 %v629, 16
        %v656 = vrot.slane %v654, 1
        %v657 = vsel %vm319, %v652, %v656
        %v658 = vshrl.u32 %v629, 16
        %v660 = vor.u32 %v658, %v656
        %v662 = vunpack.c.l.b16 %v518
        %v663 = vpack.c.b16 %v530, %v529
        %v664 = vpack.c.b16 %v532, %v531
        %v665 = vpack.c.b16 %v534, %v533
        %v666 = vpack.c.b16 %v662, %v662
        %v668 = vunpack.c.l.b16 %v519
        %v669 = vpack.c.b16 %v548, %v547
        %v670 = vpack.c.b16 %v550, %v549
        %v671 = vpack.c.b16 %v552, %v551
        %v672 = vpack.c.b16 %v668, %v668
        %v674 = vunpack.c.l.b16 %v520
        %v675 = vpack.c.b16 %v674, %v662
        %v677 = vshrl.u32 %v663, 16
        %v679 = vshll.u32 %v663, 16
        %v681 = vrot.slane %v679, 1
        %v682 = vor.u32 %v677, %v681
        %v684 = vshll.u32 %v664, 16
        %v686 = vrot.slane %v684, 1
        %v687 = vsel %vm319, %v682, %v686
        %v688 = vshrl.u32 %v664, 16
        %v690 = vor.u32 %v688, %v686
        %v692 = vshll.u32 %v665, 16
        %v694 = vrot.slane %v692, 1
        %v695 = vsel %vm319, %v690, %v694
        %v696 = vshrl.u32 %v665, 16
        %v698 = vor.u32 %v696, %v694
        %v700 = vshll.u32 %v675, 16
        %v702 = vrot.slane %v700, 1
        %v703 = vsel %vm319, %v698, %v702
        %v704 = vshrl.u32 %v675, 16
        %v706 = vor.u32 %v704, %v702
        %vm707 = vcmask 1043456
        %v708 = vrot.slane %v535, 4
        %v709 = vrot.slane %v553, 4
        %v710 = vrot.slane %v571, 4
        %v711 = vrot.slane %v605, 4
        %v712 = vrot.slane %v623, 4
        %v713 = vrot.slane %v641, 4
        %v714 = vrot.slane %v663, 4
        %v715 = vrot.slane %v669, 4
        %v716 = vrot.slane %v687, 4
        %v717 = vrot.slane %v536, 4
        %v718 = vsel %vm707, %v708, %v717
        %v719 = vrot.slane %v554, 4
        %v720 = vsel %vm707, %v709, %v719
        %v721 = vrot.slane %v579, 4
        %v722 = vsel %vm707, %v710, %v721
        %v723 = vrot.slane %v606, 4
        %v724 = vsel %vm707, %v711, %v723
        %v725 = vrot.slane %v624, 4
        %v726 = vsel %vm707, %v712, %v725
        %v727 = vrot.slane %v649, 4
        %v728 = vsel %vm707, %v713, %v727
        %v729 = vrot.slane %v664, 4
        %v730 = vsel %vm707, %v714, %v729
        %v731 = vrot.slane %v670, 4
        %v732 = vsel %vm707, %v715, %v731
        %v733 = vrot.slane %v695, 4
        %v734 = vsel %vm707, %v716, %v733
        %v735 = vrot.slane %v537, 4
        %v736 = vsel %vm707, %v717, %v735
        %v737 = vrot.slane %v555, 4
        %v738 = vsel %vm707, %v719, %v737
        %v739 = vrot.slane %v587, 4
        %v740 = vsel %vm707, %v721, %v739
        %v741 = vrot.slane %v607, 4
        %v742 = vsel %vm707, %v723, %v741
        %v743 = vrot.slane %v625, 4
        %v744 = vsel %vm707, %v725, %v743
        %v745 = vrot.slane %v657, 4
        %v746 = vsel %vm707, %v727, %v745
        %v747 = vrot.slane %v665, 4
        %v748 = vsel %vm707, %v729, %v747
        %v749 = vrot.slane %v671, 4
        %v750 = vsel %vm707, %v731, %v749
        %v751 = vrot.slane %v703, 4
        %v752 = vsel %vm707, %v733, %v751
        %v753 = vrot.slane %v538, 4
        %v754 = vsel %vm707, %v735, %v753
        %v755 = vrot.slane %v556, 4
        %v756 = vsel %vm707, %v737, %v755
        %v757 = vrot.slane %v590, 4
        %v758 = vsel %vm707, %v739, %v757
        %v759 = vrot.slane %v608, 4
        %v760 = vsel %vm707, %v741, %v759
        %v761 = vrot.slane %v626, 4
        %v762 = vsel %vm707, %v743, %v761
        %v763 = vrot.slane %v660, 4
        %v764 = vsel %vm707, %v745, %v763
        %v765 = vrot.slane %v666, 4
        %v766 = vsel %vm707, %v747, %v765
        %v767 = vrot.slane %v672, 4
        %v768 = vsel %vm707, %v749, %v767
        %v769 = vrot.slane %v706, 4
        %v770 = vsel %vm707, %v751, %v769
        %vm798 = vcmask 1043456
        %v801 = vsel %vm798, %v291, %v708
        %v805 = vsel %vm798, %v312, %v709
        %v809 = vsel %vm798, %v350, %v710
        %v813 = vsel %vm798, %v371, %v711
        %v817 = vsel %vm798, %v392, %v712
        %v821 = vsel %vm798, %v429, %v713
        %v825 = vsel %vm798, %v438, %v714
        %v829 = vsel %vm798, %v447, %v715
        %v833 = vsel %vm798, %v484, %v716
        %v835 = vld [vmem:[%s233] sm:$0xf]
        %v836 = vld [vmem:[%s233 + $0x4] sm:$0xf]
        %v837 = vld [vmem:[%s233 + $0x8] sm:$0xf]
        %v838 = vld [vmem:[%s233 + $0xc] sm:$0xf]
        %v839 = vld [vmem:[%s233 + $0x10] sm:$0xf]
        %v840 = vld [vmem:[%s233 + $0x14] sm:$0xf]
        %v841 = vld [vmem:[%s233 + $0x18] sm:$0xf]
        %v842 = vld [vmem:[%s233 + $0x1c] sm:$0xf]
        %v843 = vld [vmem:[%s233 + $0x20] sm:$0xf]
        %v844 = vld [vmem:[%s233 + $0x24] sm:$0xf]
        %v845 = vld [vmem:[%s233 + $0x28] sm:$0xf]
        %v846 = vld [vmem:[%s233 + $0x2c] sm:$0xf]
        %v847 = vld [vmem:[%s233 + $0x30] sm:$0xf]
        %v848 = vld [vmem:[%s233 + $0x34] sm:$0xf]
        %v849 = vld [vmem:[%s233 + $0x38] sm:$0xf]
        %v850 = vld [vmem:[%s233 + $0x3c] sm:$0xf]
        %v851 = vld [vmem:[%s233 + $0x40] sm:$0xf]
        %v852 = vld [vmem:[%s233 + $0x44] sm:$0xf]
        %v853 = vld [vmem:[%s233 + $0x48] sm:$0xf]
        %v854 = vld [vmem:[%s233 + $0x4c] sm:$0xf]
        %v855 = vld [vmem:[%s233 + $0x50] sm:$0xf]
        %v856 = vld [vmem:[%s233 + $0x54] sm:$0xf]
        %v857 = vld [vmem:[%s233 + $0x58] sm:$0xf]
        %v858 = vld [vmem:[%s233 + $0x5c] sm:$0xf]
        %v859 = vld [vmem:[%s233 + $0x60] sm:$0xf]
        %v860 = vld [vmem:[%s233 + $0x64] sm:$0xf]
        %v861 = vld [vmem:[%s233 + $0x68] sm:$0xf]
        %v862 = vld [vmem:[%s233 + $0x6c] sm:$0xf]
        %v863 = vld [vmem:[%s233 + $0x70] sm:$0xf]
        %v864 = vld [vmem:[%s233 + $0x74] sm:$0xf]
        %v865 = vld [vmem:[%s233 + $0x78] sm:$0xf]
        %v866 = vld [vmem:[%s233 + $0x7c] sm:$0xf]
        %v867 = vld [vmem:[%s233 + $0x80] sm:$0xf]
        %v868 = vld [vmem:[%s233 + $0x84] sm:$0xf]
        %v869 = vld [vmem:[%s233 + $0x88] sm:$0xf]
        %v870 = vld [vmem:[%s233 + $0x8c] sm:$0xf]
        %v871 = vld [vmem:[%s233 + $0x90] sm:$0xf]
        %v872 = vld [vmem:[%s233 + $0x94] sm:$0xf]
        %v873 = vld [vmem:[%s233 + $0x98] sm:$0xf]
        %v874 = vld [vmem:[%s233 + $0x9c] sm:$0xf]
        %v875 = vld [vmem:[%s233 + $0xa0] sm:$0xf]
        %v876 = vld [vmem:[%s233 + $0xa4] sm:$0xf]
        %v877 = vld [vmem:[%s233 + $0xa8] sm:$0xf]
        %v878 = vld [vmem:[%s233 + $0xac] sm:$0xf]
        %v879 = vld [vmem:[%s233 + $0xb0] sm:$0xf]
        %v880 = vld [vmem:[%s233 + $0xb4] sm:$0xf]
        %v881 = vld [vmem:[%s233 + $0xb8] sm:$0xf]
        %v882 = vld [vmem:[%s233 + $0xbc] sm:$0xf]
        %v883 = vld [vmem:[%s233 + $0xc0] sm:$0xf]
        %v884 = vld [vmem:[%s233 + $0xc4] sm:$0xf]
        %v885 = vld [vmem:[%s233 + $0xc8] sm:$0xf]
        %v886 = vld [vmem:[%s233 + $0xcc] sm:$0xf]
        %v887 = vld [vmem:[%s233 + $0xd0] sm:$0xf]
        %v888 = vld [vmem:[%s233 + $0xd4] sm:$0xf]
        %v889 = vld [vmem:[%s233 + $0xd8] sm:$0xf]
        %v890 = vld [vmem:[%s233 + $0xdc] sm:$0xf]
        %v891 = vld [vmem:[%s233 + $0xe0] sm:$0xf]
        %v892 = vld [vmem:[%s233 + $0xe4] sm:$0xf]
        %v893 = vld [vmem:[%s233 + $0xe8] sm:$0xf]
        %v894 = vld [vmem:[%s233 + $0xec] sm:$0xf]
        %v895 = vld [vmem:[%s233 + $0xf0] sm:$0xf]
        %v896 = vld [vmem:[%s233 + $0xf4] sm:$0xf]
        %v897 = vld [vmem:[%s233 + $0xf8] sm:$0xf]
        %v898 = vld [vmem:[%s233 + $0xfc] sm:$0xf]
        %v899 = vld [vmem:[%s233 + $0x100] sm:$0xf]
        %v900 = vld [vmem:[%s233 + $0x104] sm:$0xf]
        %v901 = vld [vmem:[%s233 + $0x108] sm:$0xf]
        %v902 = vld [vmem:[%s233 + $0x10c] sm:$0xf]
        %v903 = vld [vmem:[%s233 + $0x110] sm:$0xf]
        %v904 = vld [vmem:[%s233 + $0x114] sm:$0xf]
        %v905 = vld [vmem:[%s233 + $0x118] sm:$0xf]
        %v906 = vld [vmem:[%s233 + $0x11c] sm:$0xf]
        %v907 = vld [vmem:[%s233 + $0x120] sm:$0xf]
        %v908 = vld [vmem:[%s233 + $0x124] sm:$0xf]
        %v909 = vld [vmem:[%s233 + $0x128] sm:$0xf]
        %v910 = vld [vmem:[%s233 + $0x12c] sm:$0xf]
        %v911 = vld [vmem:[%s233 + $0x130] sm:$0xf]
        %v912 = vld [vmem:[%s233 + $0x134] sm:$0xf]
        %v913 = vld [vmem:[%s233 + $0x138] sm:$0xf]
        %v914 = vld [vmem:[%s233 + $0x13c] sm:$0xf]
        %v915 = vld [vmem:[%s233 + $0x140] sm:$0xf]
        %v916 = vld [vmem:[%s233 + $0x144] sm:$0xf]
        %v917 = vld [vmem:[%s233 + $0x148] sm:$0xf]
        %v918 = vld [vmem:[%s233 + $0x14c] sm:$0xf]
        %v919 = vld [vmem:[%s233 + $0x150] sm:$0xf]
        %v920 = vld [vmem:[%s233 + $0x154] sm:$0xf]
        %v921 = vld [vmem:[%s233 + $0x158] sm:$0xf]
        %v922 = vld [vmem:[%s233 + $0x15c] sm:$0xf]
        %v923 = vld [vmem:[%s233 + $0x160] sm:$0xf]
        %v924 = vld [vmem:[%s233 + $0x164] sm:$0xf]
        %v925 = vld [vmem:[%s233 + $0x168] sm:$0xf]
        %v926 = vld [vmem:[%s233 + $0x16c] sm:$0xf]
        %v927 = vld [vmem:[%s233 + $0x170] sm:$0xf]
        %v928 = vld [vmem:[%s233 + $0x174] sm:$0xf]
        %v929 = vld [vmem:[%s233 + $0x178] sm:$0xf]
        %v930 = vld [vmem:[%s233 + $0x17c] sm:$0xf]
        %v931 = vld [vmem:[%s233 + $0x180] sm:$0xf]
        %v932 = vld [vmem:[%s233 + $0x184] sm:$0xf]
        %v933 = vld [vmem:[%s233 + $0x188] sm:$0xf]
        %v934 = vld [vmem:[%s233 + $0x18c] sm:$0xf]
        %v935 = vld [vmem:[%s233 + $0x190] sm:$0xf]
        %v936 = vld [vmem:[%s233 + $0x194] sm:$0xf]
        %v937 = vld [vmem:[%s233 + $0x198] sm:$0xf]
        %v938 = vld [vmem:[%s233 + $0x19c] sm:$0xf]
        %v939 = vld [vmem:[%s233 + $0x1a0] sm:$0xf]
        %v940 = vld [vmem:[%s233 + $0x1a4] sm:$0xf]
        %v941 = vld [vmem:[%s233 + $0x1a8] sm:$0xf]
        %v942 = vld [vmem:[%s233 + $0x1ac] sm:$0xf]
        %v943 = vld [vmem:[%s233 + $0x1b0] sm:$0xf]
        %v944 = vld [vmem:[%s233 + $0x1b4] sm:$0xf]
        %v945 = vld [vmem:[%s233 + $0x1b8] sm:$0xf]
        %v946 = vld [vmem:[%s233 + $0x1bc] sm:$0xf]
        %v947 = vld [vmem:[%s233 + $0x1c0] sm:$0xf]
        %v948 = vld [vmem:[%s233 + $0x1c4] sm:$0xf]
        %v949 = vld [vmem:[%s233 + $0x1c8] sm:$0xf]
        %v950 = vld [vmem:[%s233 + $0x1cc] sm:$0xf]
        %v951 = vld [vmem:[%s233 + $0x1d0] sm:$0xf]
        %v952 = vld [vmem:[%s233 + $0x1d4] sm:$0xf]
        %v953 = vld [vmem:[%s233 + $0x1d8] sm:$0xf]
        %v954 = vld [vmem:[%s233 + $0x1dc] sm:$0xf]
        %v955 = vld [vmem:[%s233 + $0x1e0] sm:$0xf]
        %v956 = vld [vmem:[%s233 + $0x1e4] sm:$0xf]
        %v957 = vld [vmem:[%s233 + $0x1e8] sm:$0xf]
        %v958 = vld [vmem:[%s233 + $0x1ec] sm:$0xf]
        %v959 = vld [vmem:[%s233 + $0x1f0] sm:$0xf]
        %v960 = vld [vmem:[%s233 + $0x1f4] sm:$0xf]
        %v961 = vld [vmem:[%s233 + $0x1f8] sm:$0xf]
        %v962 = vld [vmem:[%s233 + $0x1fc] sm:$0xf]
        %v963 = vld [vmem:[%s233 + $0x200] sm:$0xf]
        %v964 = vld [vmem:[%s233 + $0x204] sm:$0xf]
        %v965 = vld [vmem:[%s233 + $0x208] sm:$0xf]
        %v966 = vld [vmem:[%s233 + $0x20c] sm:$0xf]
        %v967 = vld [vmem:[%s233 + $0x210] sm:$0xf]
        %v968 = vld [vmem:[%s233 + $0x214] sm:$0xf]
        %v969 = vld [vmem:[%s233 + $0x218] sm:$0xf]
        %v970 = vld [vmem:[%s233 + $0x21c] sm:$0xf]
        %v971 = vld [vmem:[%s233 + $0x220] sm:$0xf]
        %v972 = vld [vmem:[%s233 + $0x224] sm:$0xf]
        %v973 = vld [vmem:[%s233 + $0x228] sm:$0xf]
        %v974 = vld [vmem:[%s233 + $0x22c] sm:$0xf]
        %v975 = vld [vmem:[%s233 + $0x230] sm:$0xf]
        %v976 = vld [vmem:[%s233 + $0x234] sm:$0xf]
        %v977 = vld [vmem:[%s233 + $0x238] sm:$0xf]
        %v978 = vld [vmem:[%s233 + $0x23c] sm:$0xf]
        %v1123 = vunpack.c.l.b16 %v835
        %v1124 = vunpack.c.l.b16 %v836
        %v1125 = vunpack.c.l.b16 %v837
        %v1126 = vunpack.c.l.b16 %v838
        %v1127 = vunpack.c.l.b16 %v839
        %v1128 = vunpack.c.l.b16 %v840
        %v1129 = vunpack.c.l.b16 %v841
        %v1130 = vunpack.c.l.b16 %v842
        %v1131 = vunpack.c.l.b16 %v843
        %v1132 = vunpack.c.l.b16 %v844
        %v1133 = vunpack.c.l.b16 %v845
        %v1134 = vunpack.c.l.b16 %v846
        %v1135 = vunpack.c.l.b16 %v847
        %v1136 = vunpack.c.l.b16 %v848
        %v1137 = vunpack.c.l.b16 %v849
        %v1138 = vunpack.c.l.b16 %v850
        %v1139 = vunpack.c.l.b16 %v851
        %v1140 = vunpack.c.l.b16 %v852
        %v1141 = vunpack.c.l.b16 %v853
        %v1142 = vunpack.c.l.b16 %v854
        %v1143 = vunpack.c.l.b16 %v855
        %v1144 = vunpack.c.l.b16 %v856
        %v1145 = vunpack.c.l.b16 %v857
        %v1146 = vunpack.c.l.b16 %v858
        %v1147 = vunpack.c.l.b16 %v859
        %v1148 = vunpack.c.l.b16 %v860
        %v1149 = vunpack.c.l.b16 %v861
        %v1150 = vunpack.c.l.b16 %v862
        %v1151 = vunpack.c.l.b16 %v863
        %v1152 = vunpack.c.l.b16 %v864
        %v1153 = vunpack.c.l.b16 %v865
        %v1154 = vunpack.c.l.b16 %v866
        %v1155 = vunpack.c.l.b16 %v867
        %v1156 = vunpack.c.l.b16 %v868
        %v1157 = vunpack.c.l.b16 %v869
        %v1158 = vunpack.c.l.b16 %v870
        %v1159 = vunpack.c.l.b16 %v871
        %v1160 = vunpack.c.l.b16 %v872
        %v1161 = vunpack.c.l.b16 %v873
        %v1162 = vunpack.c.l.b16 %v874
        %v1163 = vunpack.c.l.b16 %v875
        %v1164 = vunpack.c.l.b16 %v876
        %v1165 = vunpack.c.l.b16 %v877
        %v1166 = vunpack.c.l.b16 %v878
        %v1167 = vunpack.c.l.b16 %v879
        %v1168 = vunpack.c.l.b16 %v880
        %v1169 = vunpack.c.l.b16 %v881
        %v1170 = vunpack.c.l.b16 %v882
        %v1171 = vunpack.c.l.b16 %v883
        %v1172 = vunpack.c.l.b16 %v884
        %v1173 = vunpack.c.l.b16 %v885
        %v1174 = vunpack.c.l.b16 %v886
        %v1175 = vunpack.c.l.b16 %v887
        %v1176 = vunpack.c.l.b16 %v888
        %v1177 = vunpack.c.l.b16 %v889
        %v1178 = vunpack.c.l.b16 %v890
        %v1179 = vunpack.c.l.b16 %v891
        %v1180 = vunpack.c.l.b16 %v892
        %v1181 = vunpack.c.l.b16 %v893
        %v1182 = vunpack.c.l.b16 %v894
        %v1183 = vunpack.c.l.b16 %v895
        %v1184 = vunpack.c.l.b16 %v896
        %v1185 = vunpack.c.l.b16 %v897
        %v1186 = vunpack.c.l.b16 %v898
        %v1187 = vunpack.c.l.b16 %v899
        %v1188 = vunpack.c.l.b16 %v900
        %v1189 = vunpack.c.l.b16 %v901
        %v1190 = vunpack.c.l.b16 %v902
        %v1191 = vunpack.c.l.b16 %v903
        %v1192 = vunpack.c.l.b16 %v904
        %v1193 = vunpack.c.l.b16 %v905
        %v1194 = vunpack.c.l.b16 %v906
        %v1195 = vunpack.c.l.b16 %v907
        %v1196 = vunpack.c.l.b16 %v908
        %v1197 = vunpack.c.l.b16 %v909
        %v1198 = vunpack.c.l.b16 %v910
        %v1199 = vunpack.c.l.b16 %v911
        %v1200 = vunpack.c.l.b16 %v912
        %v1201 = vunpack.c.l.b16 %v913
        %v1202 = vunpack.c.l.b16 %v914
        %v1203 = vunpack.c.l.b16 %v915
        %v1204 = vunpack.c.l.b16 %v916
        %v1205 = vunpack.c.l.b16 %v917
        %v1206 = vunpack.c.l.b16 %v918
        %v1207 = vunpack.c.l.b16 %v919
        %v1208 = vunpack.c.l.b16 %v920
        %v1209 = vunpack.c.l.b16 %v921
        %v1210 = vunpack.c.l.b16 %v922
        %v1211 = vunpack.c.l.b16 %v923
        %v1212 = vunpack.c.l.b16 %v924
        %v1213 = vunpack.c.l.b16 %v925
        %v1214 = vunpack.c.l.b16 %v926
        %v1215 = vunpack.c.l.b16 %v927
        %v1216 = vunpack.c.l.b16 %v928
        %v1217 = vunpack.c.l.b16 %v929
        %v1218 = vunpack.c.l.b16 %v930
        %v1219 = vunpack.c.l.b16 %v931
        %v1220 = vunpack.c.l.b16 %v932
        %v1221 = vunpack.c.l.b16 %v933
        %v1222 = vunpack.c.l.b16 %v934
        %v1223 = vunpack.c.l.b16 %v935
        %v1224 = vunpack.c.l.b16 %v936
        %v1225 = vunpack.c.l.b16 %v937
        %v1226 = vunpack.c.l.b16 %v938
        %v1227 = vunpack.c.l.b16 %v939
        %v1228 = vunpack.c.l.b16 %v940
        %v1229 = vunpack.c.l.b16 %v941
        %v1230 = vunpack.c.l.b16 %v942
        %v1231 = vunpack.c.l.b16 %v943
        %v1232 = vunpack.c.l.b16 %v944
        %v1233 = vunpack.c.l.b16 %v945
        %v1234 = vunpack.c.l.b16 %v946
        %v1235 = vunpack.c.l.b16 %v947
        %v1236 = vunpack.c.l.b16 %v948
        %v1237 = vunpack.c.l.b16 %v949
        %v1238 = vunpack.c.l.b16 %v950
        %v1239 = vunpack.c.l.b16 %v951
        %v1240 = vunpack.c.l.b16 %v952
        %v1241 = vunpack.c.l.b16 %v953
        %v1242 = vunpack.c.l.b16 %v954
        %v1243 = vunpack.c.l.b16 %v955
        %v1244 = vunpack.c.l.b16 %v956
        %v1245 = vunpack.c.l.b16 %v957
        %v1246 = vunpack.c.l.b16 %v958
        %v1247 = vunpack.c.l.b16 %v959
        %v1248 = vunpack.c.l.b16 %v960
        %v1249 = vunpack.c.l.b16 %v961
        %v1250 = vunpack.c.l.b16 %v962
        %v1251 = vunpack.c.l.b16 %v963
        %v1252 = vunpack.c.l.b16 %v964
        %v1253 = vunpack.c.l.b16 %v965
        %v1254 = vunpack.c.l.b16 %v966
        %v1255 = vunpack.c.l.b16 %v967
        %v1256 = vunpack.c.l.b16 %v968
        %v1257 = vunpack.c.l.b16 %v969
        %v1258 = vunpack.c.l.b16 %v970
        %v1259 = vunpack.c.l.b16 %v971
        %v1260 = vunpack.c.l.b16 %v972
        %v1261 = vunpack.c.l.b16 %v973
        %v1262 = vunpack.c.l.b16 %v974
        %v1263 = vunpack.c.l.b16 %v975
        %v1264 = vunpack.c.l.b16 %v976
        %v1265 = vunpack.c.l.b16 %v977
        %v1266 = vunpack.c.l.b16 %v978
        %v1267 = vpack.c.b16 %v1124, %v1123
        %v1268 = vpack.c.b16 %v1126, %v1125
        %v1269 = vpack.c.b16 %v1128, %v1127
        %v1270 = vpack.c.b16 %v1130, %v1129
        %v1271 = vpack.c.b16 %v1132, %v1131
        %v1272 = vpack.c.b16 %v1134, %v1133
        %v1273 = vpack.c.b16 %v1136, %v1135
        %v1274 = vpack.c.b16 %v1138, %v1137
        %v1275 = vpack.c.b16 %v1140, %v1139
        %v1276 = vpack.c.b16 %v1142, %v1141
        %v1277 = vpack.c.b16 %v1144, %v1143
        %v1278 = vpack.c.b16 %v1146, %v1145
        %v1279 = vpack.c.b16 %v1148, %v1147
        %v1280 = vpack.c.b16 %v1150, %v1149
        %v1281 = vpack.c.b16 %v1152, %v1151
        %v1282 = vpack.c.b16 %v1154, %v1153
        %v1283 = vpack.c.b16 %v1156, %v1155
        %v1284 = vpack.c.b16 %v1158, %v1157
        %v1285 = vpack.c.b16 %v1160, %v1159
        %v1286 = vpack.c.b16 %v1162, %v1161
        %v1287 = vpack.c.b16 %v1164, %v1163
        %v1288 = vpack.c.b16 %v1166, %v1165
        %v1289 = vpack.c.b16 %v1168, %v1167
        %v1290 = vpack.c.b16 %v1170, %v1169
        %v1291 = vpack.c.b16 %v1172, %v1171
        %v1292 = vpack.c.b16 %v1174, %v1173
        %v1293 = vpack.c.b16 %v1176, %v1175
        %v1294 = vpack.c.b16 %v1178, %v1177
        %v1295 = vpack.c.b16 %v1180, %v1179
        %v1296 = vpack.c.b16 %v1182, %v1181
        %v1297 = vpack.c.b16 %v1184, %v1183
        %v1298 = vpack.c.b16 %v1186, %v1185
        %v1299 = vpack.c.b16 %v1188, %v1187
        %v1300 = vpack.c.b16 %v1190, %v1189
        %v1301 = vpack.c.b16 %v1192, %v1191
        %v1302 = vpack.c.b16 %v1194, %v1193
        %v1303 = vpack.c.b16 %v1196, %v1195
        %v1304 = vpack.c.b16 %v1198, %v1197
        %v1305 = vpack.c.b16 %v1200, %v1199
        %v1306 = vpack.c.b16 %v1202, %v1201
        %v1307 = vpack.c.b16 %v1204, %v1203
        %v1308 = vpack.c.b16 %v1206, %v1205
        %v1309 = vpack.c.b16 %v1208, %v1207
        %v1310 = vpack.c.b16 %v1210, %v1209
        %v1311 = vpack.c.b16 %v1212, %v1211
        %v1312 = vpack.c.b16 %v1214, %v1213
        %v1313 = vpack.c.b16 %v1216, %v1215
        %v1314 = vpack.c.b16 %v1218, %v1217
        %v1315 = vpack.c.b16 %v1220, %v1219
        %v1316 = vpack.c.b16 %v1222, %v1221
        %v1317 = vpack.c.b16 %v1224, %v1223
        %v1318 = vpack.c.b16 %v1226, %v1225
        %v1319 = vpack.c.b16 %v1228, %v1227
        %v1320 = vpack.c.b16 %v1230, %v1229
        %v1321 = vpack.c.b16 %v1232, %v1231
        %v1322 = vpack.c.b16 %v1234, %v1233
        %v1323 = vpack.c.b16 %v1236, %v1235
        %v1324 = vpack.c.b16 %v1238, %v1237
        %v1325 = vpack.c.b16 %v1240, %v1239
        %v1326 = vpack.c.b16 %v1242, %v1241
        %v1327 = vpack.c.b16 %v1244, %v1243
        %v1328 = vpack.c.b16 %v1246, %v1245
        %v1329 = vpack.c.b16 %v1248, %v1247
        %v1330 = vpack.c.b16 %v1250, %v1249
        %v1331 = vpack.c.b16 %v1252, %v1251
        %v1332 = vpack.c.b16 %v1254, %v1253
        %v1333 = vpack.c.b16 %v1256, %v1255
        %v1334 = vpack.c.b16 %v1258, %v1257
        %v1335 = vpack.c.b16 %v1260, %v1259
        %v1336 = vpack.c.b16 %v1262, %v1261
        %v1337 = vpack.c.b16 %v1264, %v1263
        %v1338 = vpack.c.b16 %v1266, %v1265
        %1411 = vmatprep.subr.bf16.mxu0 0
        %1412 = vmatpush1.bf16.msra.mxu0 %v1267
        %1413 = vmatprep.subr.bf16.mxu0 0
        %1414 = vmatpush1.bf16.msra.mxu0 %v1268
        %1415 = vmatprep.subr.bf16.mxu0 0
        %1416 = vmatpush1.bf16.msra.mxu0 %v1269
        %1417 = vmatprep.subr.bf16.mxu0 0
        %1418 = vmatpush1.bf16.msra.mxu0 %v1270
        %1419 = vmatprep.subr.bf16.mxu0 0
        %1420 = vmatpush1.bf16.msra.mxu0 %v1271
        %1421 = vmatprep.subr.bf16.mxu0 0
        %1422 = vmatpush1.bf16.msra.mxu0 %v1272
        %1423 = vmatprep.subr.bf16.mxu0 0
        %1424 = vmatpush1.bf16.msra.mxu0 %v1273
        %1425 = vmatprep.subr.bf16.mxu0 0
        %1426 = vmatpush1.bf16.msra.mxu0 %v1274
        %1427 = vmatprep.subr.bf16.mxu0 0
        %1428 = vmatpush1.bf16.msra.mxu0 %v1275
        %1429 = vmatprep.subr.bf16.mxu0 0
        %1430 = vmatpush1.bf16.msra.mxu0 %v1276
        %1431 = vmatprep.subr.bf16.mxu0 0
        %1432 = vmatpush1.bf16.msra.mxu0 %v1277
        %1433 = vmatprep.subr.bf16.mxu0 0
        %1434 = vmatpush1.bf16.msra.mxu0 %v1278
        %1435 = vmatprep.subr.bf16.mxu0 0
        %1436 = vmatpush1.bf16.msra.mxu0 %v1279
        %1437 = vmatprep.subr.bf16.mxu0 0
        %1438 = vmatpush1.bf16.msra.mxu0 %v1280
        %1439 = vmatprep.subr.bf16.mxu0 0
        %1440 = vmatpush1.bf16.msra.mxu0 %v1281
        %1441 = vmatprep.subr.bf16.mxu0 0
        %1442 = vmatpush1.bf16.msra.mxu0 %v1282
        %1443 = vmatprep.mubr.bf16.mxu0 %v309
        %1444 = vmatmul.mubr.bf16.gmra.mrb[0].mxu0 %v288
        %v1445 = vpop.f32.mrb[0].mxu0
        %v1446 = vadd.f32 0.0, %v1445
        %v1447 = vpop.f32.mrb[0].mxu0
        %v1448 = vpop.f32.mrb[0].mxu0
        %v1449 = vadd.f32 0.0, %v1448
        %v1450 = vpop.f32.mrb[0].mxu0
        %1451 = vmatprep.mubr.bf16.mxu0 %v310
        %1452 = vmatmul.mubr.bf16.gmra.mrb[0].mxu0 %v289
        %v1453 = vpop.f32.mrb[0].mxu0
        %v1454 = vadd.f32 0.0, %v1453
        %v1455 = vpop.f32.mrb[0].mxu0
        %v1456 = vpop.f32.mrb[0].mxu0
        %v1457 = vadd.f32 0.0, %v1456
        %v1458 = vpop.f32.mrb[0].mxu0
        %1459 = vmatprep.mubr.bf16.mxu0 %v311
        %1460 = vmatmul.mubr.bf16.gmra.mrb[0].mxu0 %v290
        %v1461 = vpop.f32.mrb[0].mxu0
        %v1462 = vadd.f32 0.0, %v1461
        %v1463 = vpop.f32.mrb[0].mxu0
        %v1464 = vpop.f32.mrb[0].mxu0
        %v1465 = vadd.f32 0.0, %v1464
        %v1466 = vpop.f32.mrb[0].mxu0
        %1467 = vmatprep.mubr.bf16.mxu0 %v805
        %1468 = vmatmul.mubr.bf16.gmra.mrb[0].mxu0 %v801
        %v1469 = vpop.f32.mrb[0].mxu0
        %v1470 = vadd.f32 0.0, %v1469
        %v1471 = vpop.f32.mrb[0].mxu0
        %v1472 = vpop.f32.mrb[0].mxu0
        %v1473 = vadd.f32 0.0, %v1472
        %v1474 = vpop.f32.mrb[0].mxu0
        %1475 = vmatprep.mubr.bf16.mxu0 %v720
        %1476 = vmatmul.mubr.bf16.gmra.mrb[0].mxu0 %v718
        %v1477 = vpop.f32.mrb[0].mxu0
        %v1478 = vadd.f32 0.0, %v1477
        %v1479 = vpop.f32.mrb[0].mxu0
        %v1480 = vpop.f32.mrb[0].mxu0
        %v1481 = vadd.f32 0.0, %v1480
        %v1482 = vpop.f32.mrb[0].mxu0
        %1483 = vmatprep.mubr.bf16.mxu0 %v738
        %1484 = vmatmul.mubr.bf16.gmra.mrb[0].mxu0 %v736
        %v1485 = vpop.f32.mrb[0].mxu0
        %v1486 = vadd.f32 0.0, %v1485
        %v1487 = vpop.f32.mrb[0].mxu0
        %v1488 = vpop.f32.mrb[0].mxu0
        %v1489 = vadd.f32 0.0, %v1488
        %v1490 = vpop.f32.mrb[0].mxu0
        %1491 = vmatprep.mubr.bf16.mxu0 %v756
        %1492 = vmatmul.mubr.bf16.gmra.mrb[0].mxu0 %v754
        %v1493 = vpop.f32.mrb[0].mxu0
        %v1494 = vadd.f32 0.0, %v1493
        %v1495 = vpop.f32.mrb[0].mxu0
        %v1496 = vpop.f32.mrb[0].mxu0
        %v1497 = vadd.f32 0.0, %v1496
        %v1498 = vpop.f32.mrb[0].mxu0
        %1499 = vdwg.mxu0
        %1500 = vmatprep.subr.bf16.mxu0 0
        %1501 = vmatpush1.bf16.msra.mxu0 %v1283
        %1502 = vmatprep.subr.bf16.mxu0 0
        %1503 = vmatpush1.bf16.msra.mxu0 %v1284
        %1504 = vmatprep.subr.bf16.mxu0 0
        %1505 = vmatpush1.bf16.msra.mxu0 %v1285
        %1506 = vmatprep.subr.bf16.mxu0 0
        %1507 = vmatpush1.bf16.msra.mxu0 %v1286
        %1508 = vmatprep.subr.bf16.mxu0 0
        %1509 = vmatpush1.bf16.msra.mxu0 %v1287
        %1510 = vmatprep.subr.bf16.mxu0 0
        %1511 = vmatpush1.bf16.msra.mxu0 %v1288
        %1512 = vmatprep.subr.bf16.mxu0 0
        %1513 = vmatpush1.bf16.msra.mxu0 %v1289
        %1514 = vmatprep.subr.bf16.mxu0 0
        %1515 = vmatpush1.bf16.msra.mxu0 %v1290
        %1516 = vmatprep.subr.bf16.mxu0 0
        %1517 = vmatpush1.bf16.msra.mxu0 %v1291
        %1518 = vmatprep.subr.bf16.mxu0 0
        %1519 = vmatpush1.bf16.msra.mxu0 %v1292
        %1520 = vmatprep.subr.bf16.mxu0 0
        %1521 = vmatpush1.bf16.msra.mxu0 %v1293
        %1522 = vmatprep.subr.bf16.mxu0 0
        %1523 = vmatpush1.bf16.msra.mxu0 %v1294
        %1524 = vmatprep.subr.bf16.mxu0 0
        %1525 = vmatpush1.bf16.msra.mxu0 %v1295
        %1526 = vmatprep.subr.bf16.mxu0 0
        %1527 = vmatpush1.bf16.msra.mxu0 %v1296
        %1528 = vmatprep.subr.bf16.mxu0 0
        %1529 = vmatpush1.bf16.msra.mxu0 %v1297
        %1530 = vmatprep.subr.bf16.mxu0 0
        %1531 = vmatpush1.bf16.msra.mxu0 %v1298
        %1532 = vmatprep.mubr.bf16.mxu0 %v368
        %1533 = vmatmul.mubr.bf16.gmra.mrb[0].mxu0 %v331
        %v1534 = vpop.f32.mrb[0].mxu0
        %v1535 = vadd.f32 %v1446, %v1534
        %v1536 = vpop.f32.mrb[0].mxu0
        %v1537 = vpop.f32.mrb[0].mxu0
        %v1538 = vadd.f32 %v1449, %v1537
        %v1539 = vpop.f32.mrb[0].mxu0
        %1540 = vmatprep.mubr.bf16.mxu0 %v369
        %1541 = vmatmul.mubr.bf16.gmra.mrb[0].mxu0 %v339
        %v1542 = vpop.f32.mrb[0].mxu0
        %v1543 = vadd.f32 %v1454, %v1542
        %v1544 = vpop.f32.mrb[0].mxu0
        %v1545 = vpop.f32.mrb[0].mxu0
        %v1546 = vadd.f32 %v1457, %v1545
        %v1547 = vpop.f32.mrb[0].mxu0
        %1548 = vmatprep.mubr.bf16.mxu0 %v370
        %1549 = vmatmul.mubr.bf16.gmra.mrb[0].mxu0 %v347
        %v1550 = vpop.f32.mrb[0].mxu0
        %v1551 = vadd.f32 %v1462, %v1550
        %v1552 = vpop.f32.mrb[0].mxu0
        %v1553 = vpop.f32.mrb[0].mxu0
        %v1554 = vadd.f32 %v1465, %v1553
        %v1555 = vpop.f32.mrb[0].mxu0
        %1556 = vmatprep.mubr.bf16.mxu0 %v813
        %1557 = vmatmul.mubr.bf16.gmra.mrb[0].mxu0 %v809
        %v1558 = vpop.f32.mrb[0].mxu0
        %v1559 = vadd.f32 %v1470, %v1558
        %v1560 = vpop.f32.mrb[0].mxu0
        %v1561 = vpop.f32.mrb[0].mxu0
        %v1562 = vadd.f32 %v1473, %v1561
        %v1563 = vpop.f32.mrb[0].mxu0
        %1564 = vmatprep.mubr.bf16.mxu0 %v724
        %1565 = vmatmul.mubr.bf16.gmra.mrb[0].mxu0 %v722
        %v1566 = vpop.f32.mrb[0].mxu0
        %v1567 = vadd.f32 %v1478, %v1566
        %v1568 = vpop.f32.mrb[0].mxu0
        %v1569 = vpop.f32.mrb[0].mxu0
        %v1570 = vadd.f32 %v1481, %v1569
        %v1571 = vpop.f32.mrb[0].mxu0
        %1572 = vmatprep.mubr.bf16.mxu0 %v742
        %1573 = vmatmul.mubr.bf16.gmra.mrb[0].mxu0 %v740
        %v1574 = vpop.f32.mrb[0].mxu0
        %v1575 = vadd.f32 %v1486, %v1574
        %v1576 = vpop.f32.mrb[0].mxu0
        %v1577 = vpop.f32.mrb[0].mxu0
        %v1578 = vadd.f32 %v1489, %v1577
        %v1579 = vpop.f32.mrb[0].mxu0
        %1580 = vmatprep.mubr.bf16.mxu0 %v760
        %1581 = vmatmul.mubr.bf16.gmra.mrb[0].mxu0 %v758
        %v1582 = vpop.f32.mrb[0].mxu0
        %v1583 = vadd.f32 %v1494, %v1582
        %v1584 = vpop.f32.mrb[0].mxu0
        %v1585 = vpop.f32.mrb[0].mxu0
        %v1586 = vadd.f32 %v1497, %v1585
        %v1587 = vpop.f32.mrb[0].mxu0
        %1588 = vdwg.mxu0
        %1589 = vmatprep.subr.bf16.mxu0 0
        %1590 = vmatpush1.bf16.msra.mxu0 %v1299
        %1591 = vmatprep.subr.bf16.mxu0 0
        %1592 = vmatpush1.bf16.msra.mxu0 %v1300
        %1593 = vmatprep.subr.bf16.mxu0 0
        %1594 = vmatpush1.bf16.msra.mxu0 %v1301
        %1595 = vmatprep.subr.bf16.mxu0 0
        %1596 = vmatpush1.bf16.msra.mxu0 %v1302
        %1597 = vmatprep.subr.bf16.mxu0 0
        %1598 = vmatpush1.bf16.msra.mxu0 %v1303
        %1599 = vmatprep.subr.bf16.mxu0 0
        %1600 = vmatpush1.bf16.msra.mxu0 %v1304
        %1601 = vmatprep.subr.bf16.mxu0 0
        %1602 = vmatpush1.bf16.msra.mxu0 %v1305
        %1603 = vmatprep.subr.bf16.mxu0 0
        %1604 = vmatpush1.bf16.msra.mxu0 %v1306
        %1605 = vmatprep.subr.bf16.mxu0 0
        %1606 = vmatpush1.bf16.msra.mxu0 %v1307
        %1607 = vmatprep.subr.bf16.mxu0 0
        %1608 = vmatpush1.bf16.msra.mxu0 %v1308
        %1609 = vmatprep.subr.bf16.mxu0 0
        %1610 = vmatpush1.bf16.msra.mxu0 %v1309
        %1611 = vmatprep.subr.bf16.mxu0 0
        %1612 = vmatpush1.bf16.msra.mxu0 %v1310
        %1613 = vmatprep.subr.bf16.mxu0 0
        %1614 = vmatpush1.bf16.msra.mxu0 %v1311
        %1615 = vmatprep.subr.bf16.mxu0 0
        %1616 = vmatpush1.bf16.msra.mxu0 %v1312
        %1617 = vmatprep.subr.bf16.mxu0 0
        %1618 = vmatpush1.bf16.msra.mxu0 %v1313
        %1619 = vmatprep.subr.bf16.mxu0 0
        %1620 = vmatpush1.bf16.msra.mxu0 %v1314
        %1621 = vmatprep.mubr.bf16.mxu0 %v410
        %1622 = vmatmul.mubr.bf16.gmra.mrb[0].mxu0 %v389
        %v1623 = vpop.f32.mrb[0].mxu0
        %v1624 = vadd.f32 %v1535, %v1623
        %v1625 = vpop.f32.mrb[0].mxu0
        %v1626 = vpop.f32.mrb[0].mxu0
        %v1627 = vadd.f32 %v1538, %v1626
        %v1628 = vpop.f32.mrb[0].mxu0
        %1629 = vmatprep.mubr.bf16.mxu0 %v418
        %1630 = vmatmul.mubr.bf16.gmra.mrb[0].mxu0 %v390
        %v1631 = vpop.f32.mrb[0].mxu0
        %v1632 = vadd.f32 %v1543, %v1631
        %v1633 = vpop.f32.mrb[0].mxu0
        %v1634 = vpop.f32.mrb[0].mxu0
        %v1635 = vadd.f32 %v1546, %v1634
        %v1636 = vpop.f32.mrb[0].mxu0
        %1637 = vmatprep.mubr.bf16.mxu0 %v426
        %1638 = vmatmul.mubr.bf16.gmra.mrb[0].mxu0 %v391
        %v1639 = vpop.f32.mrb[0].mxu0
        %v1640 = vadd.f32 %v1551, %v1639
        %v1641 = vpop.f32.mrb[0].mxu0
        %v1642 = vpop.f32.mrb[0].mxu0
        %v1643 = vadd.f32 %v1554, %v1642
        %v1644 = vpop.f32.mrb[0].mxu0
        %1645 = vmatprep.mubr.bf16.mxu0 %v821
        %1646 = vmatmul.mubr.bf16.gmra.mrb[0].mxu0 %v817
        %v1647 = vpop.f32.mrb[0].mxu0
        %v1648 = vadd.f32 %v1559, %v1647
        %v1649 = vpop.f32.mrb[0].mxu0
        %v1650 = vpop.f32.mrb[0].mxu0
        %v1651 = vadd.f32 %v1562, %v1650
        %v1652 = vpop.f32.mrb[0].mxu0
        %1653 = vmatprep.mubr.bf16.mxu0 %v728
        %1654 = vmatmul.mubr.bf16.gmra.mrb[0].mxu0 %v726
        %v1655 = vpop.f32.mrb[0].mxu0
        %v1656 = vadd.f32 %v1567, %v1655
        %v1657 = vpop.f32.mrb[0].mxu0
        %v1658 = vpop.f32.mrb[0].mxu0
        %v1659 = vadd.f32 %v1570, %v1658
        %v1660 = vpop.f32.mrb[0].mxu0
        %1661 = vmatprep.mubr.bf16.mxu0 %v746
        %1662 = vmatmul.mubr.bf16.gmra.mrb[0].mxu0 %v744
        %v1663 = vpop.f32.mrb[0].mxu0
        %v1664 = vadd.f32 %v1575, %v1663
        %v1665 = vpop.f32.mrb[0].mxu0
        %v1666 = vpop.f32.mrb[0].mxu0
        %v1667 = vadd.f32 %v1578, %v1666
        %v1668 = vpop.f32.mrb[0].mxu0
        %1669 = vmatprep.mubr.bf16.mxu0 %v764
        %1670 = vmatmul.mubr.bf16.gmra.mrb[0].mxu0 %v762
        %v1671 = vpop.f32.mrb[0].mxu0
        %v1672 = vadd.f32 %v1583, %v1671
        %v1673 = vpop.f32.mrb[0].mxu0
        %v1674 = vpop.f32.mrb[0].mxu0
        %v1675 = vadd.f32 %v1586, %v1674
        %v1676 = vpop.f32.mrb[0].mxu0
        %1677 = vdwg.mxu0
        %1678 = vmatprep.subr.bf16.mxu0 0
        %1679 = vmatpush1.bf16.msra.mxu0 %v1315
        %1680 = vmatprep.subr.bf16.mxu0 0
        %1681 = vmatpush1.bf16.msra.mxu0 %v1316
        %1682 = vmatprep.subr.bf16.mxu0 0
        %1683 = vmatpush1.bf16.msra.mxu0 %v1317
        %1684 = vmatprep.subr.bf16.mxu0 0
        %1685 = vmatpush1.bf16.msra.mxu0 %v1318
        %1686 = vmatprep.subr.bf16.mxu0 0
        %1687 = vmatpush1.bf16.msra.mxu0 %v1319
        %1688 = vmatprep.subr.bf16.mxu0 0
        %1689 = vmatpush1.bf16.msra.mxu0 %v1320
        %1690 = vmatprep.subr.bf16.mxu0 0
        %1691 = vmatpush1.bf16.msra.mxu0 %v1321
        %1692 = vmatprep.subr.bf16.mxu0 0
        %1693 = vmatpush1.bf16.msra.mxu0 %v1322
        %1694 = vmatprep.subr.bf16.mxu0 0
        %1695 = vmatpush1.bf16.msra.mxu0 %v1323
        %1696 = vmatprep.subr.bf16.mxu0 0
        %1697 = vmatpush1.bf16.msra.mxu0 %v1324
        %1698 = vmatprep.subr.bf16.mxu0 0
        %1699 = vmatpush1.bf16.msra.mxu0 %v1325
        %1700 = vmatprep.subr.bf16.mxu0 0
        %1701 = vmatpush1.bf16.msra.mxu0 %v1326
        %1702 = vmatprep.subr.bf16.mxu0 0
        %1703 = vmatpush1.bf16.msra.mxu0 %v1327
        %1704 = vmatprep.subr.bf16.mxu0 0
        %1705 = vmatpush1.bf16.msra.mxu0 %v1328
        %1706 = vmatprep.subr.bf16.mxu0 0
        %1707 = vmatpush1.bf16.msra.mxu0 %v1329
        %1708 = vmatprep.subr.bf16.mxu0 0
        %1709 = vmatpush1.bf16.msra.mxu0 %v1330
        %1710 = vmatprep.mubr.bf16.mxu0 %v444
        %1711 = vmatmul.mubr.bf16.gmra.mrb[0].mxu0 %v435
        %v1712 = vpop.f32.mrb[0].mxu0
        %v1713 = vadd.f32 %v1624, %v1712
        %v1714 = vpop.f32.mrb[0].mxu0
        %v1715 = vpop.f32.mrb[0].mxu0
        %v1716 = vadd.f32 %v1627, %v1715
        %v1717 = vpop.f32.mrb[0].mxu0
        %1718 = vmatprep.mubr.bf16.mxu0 %v445
        %1719 = vmatmul.mubr.bf16.gmra.mrb[0].mxu0 %v436
        %v1720 = vpop.f32.mrb[0].mxu0
        %v1721 = vadd.f32 %v1632, %v1720
        %v1722 = vpop.f32.mrb[0].mxu0
        %v1723 = vpop.f32.mrb[0].mxu0
        %v1724 = vadd.f32 %v1635, %v1723
        %v1725 = vpop.f32.mrb[0].mxu0
        %1726 = vmatprep.mubr.bf16.mxu0 %v446
        %1727 = vmatmul.mubr.bf16.gmra.mrb[0].mxu0 %v437
        %v1728 = vpop.f32.mrb[0].mxu0
        %v1729 = vadd.f32 %v1640, %v1728
        %v1730 = vpop.f32.mrb[0].mxu0
        %v1731 = vpop.f32.mrb[0].mxu0
        %v1732 = vadd.f32 %v1643, %v1731
        %v1733 = vpop.f32.mrb[0].mxu0
        %1734 = vmatprep.mubr.bf16.mxu0 %v829
        %1735 = vmatmul.mubr.bf16.gmra.mrb[0].mxu0 %v825
        %v1736 = vpop.f32.mrb[0].mxu0
        %v1737 = vadd.f32 %v1648, %v1736
        %v1738 = vpop.f32.mrb[0].mxu0
        %v1739 = vpop.f32.mrb[0].mxu0
        %v1740 = vadd.f32 %v1651, %v1739
        %v1741 = vpop.f32.mrb[0].mxu0
        %1742 = vmatprep.mubr.bf16.mxu0 %v732
        %1743 = vmatmul.mubr.bf16.gmra.mrb[0].mxu0 %v730
        %v1744 = vpop.f32.mrb[0].mxu0
        %v1745 = vadd.f32 %v1656, %v1744
        %v1746 = vpop.f32.mrb[0].mxu0
        %v1747 = vpop.f32.mrb[0].mxu0
        %v1748 = vadd.f32 %v1659, %v1747
        %v1749 = vpop.f32.mrb[0].mxu0
        %1750 = vmatprep.mubr.bf16.mxu0 %v750
        %1751 = vmatmul.mubr.bf16.gmra.mrb[0].mxu0 %v748
        %v1752 = vpop.f32.mrb[0].mxu0
        %v1753 = vadd.f32 %v1664, %v1752
        %v1754 = vpop.f32.mrb[0].mxu0
        %v1755 = vpop.f32.mrb[0].mxu0
        %v1756 = vadd.f32 %v1667, %v1755
        %v1757 = vpop.f32.mrb[0].mxu0
        %1758 = vmatprep.mubr.bf16.mxu0 %v768
        %1759 = vmatmul.mubr.bf16.gmra.mrb[0].mxu0 %v766
        %v1760 = vpop.f32.mrb[0].mxu0
        %v1761 = vadd.f32 %v1672, %v1760
        %v1762 = vpop.f32.mrb[0].mxu0
        %v1763 = vpop.f32.mrb[0].mxu0
        %v1764 = vadd.f32 %v1675, %v1763
        %v1765 = vpop.f32.mrb[0].mxu0
        %1766 = vdwg.mxu0
        %1767 = vmatprep.subr.bf16.mxu0 0
        %1768 = vmatpush1.bf16.msra.mxu0 %v1331
        %1769 = vmatprep.subr.bf16.mxu0 0
        %1770 = vmatpush1.bf16.msra.mxu0 %v1332
        %1771 = vmatprep.subr.bf16.mxu0 0
        %1772 = vmatpush1.bf16.msra.mxu0 %v1333
        %1773 = vmatprep.subr.bf16.mxu0 0
        %1774 = vmatpush1.bf16.msra.mxu0 %v1334
        %1775 = vmatprep.subr.bf16.mxu0 0
        %1776 = vmatpush1.bf16.msra.mxu0 %v1335
        %1777 = vmatprep.subr.bf16.mxu0 0
        %1778 = vmatpush1.bf16.msra.mxu0 %v1336
        %1779 = vmatprep.subr.bf16.mxu0 0
        %1780 = vmatpush1.bf16.msra.mxu0 %v1337
        %1781 = vmatprep.subr.bf16.mxu0 0
        %1782 = vmatpush1.bf16.msra.mxu0 %v1338
        %1783 = vmatprep.subr.bf16.mxu0 0
        %1784 = vmatpush1.bf16.msra.mxu0 0
        %1785 = vmatprep.subr.bf16.mxu0 0
        %1786 = vmatpush1.bf16.msra.mxu0 0
        %1787 = vmatprep.subr.bf16.mxu0 0
        %1788 = vmatpush1.bf16.msra.mxu0 0
        %1789 = vmatprep.subr.bf16.mxu0 0
        %1790 = vmatpush1.bf16.msra.mxu0 0
        %1791 = vmatprep.subr.bf16.mxu0 0
        %1792 = vmatpush1.bf16.msra.mxu0 0
        %1793 = vmatprep.subr.bf16.mxu0 0
        %1794 = vmatpush1.bf16.msra.mxu0 0
        %1795 = vmatprep.subr.bf16.mxu0 0
        %1796 = vmatpush1.bf16.msra.mxu0 0
        %1797 = vmatprep.subr.bf16.mxu0 0
        %1798 = vmatpush1.bf16.msra.mxu0 0
        %1799 = vmatprep.mubr.bf16.mxu0 0
        %1800 = vmatmul.mubr.bf16.gmra.mrb[0].mxu0 %v465
        %v1801 = vpop.f32.mrb[0].mxu0
        %v1802 = vadd.f32 %v1713, %v1801
        %v1803 = vpop.f32.mrb[0].mxu0
        %v1804 = vpop.f32.mrb[0].mxu0
        %v1805 = vadd.f32 %v1716, %v1804
        %v1806 = vpop.f32.mrb[0].mxu0
        %1807 = vmatprep.mubr.bf16.mxu0 0
        %1808 = vmatmul.mubr.bf16.gmra.mrb[0].mxu0 %v473
        %v1809 = vpop.f32.mrb[0].mxu0
        %v1810 = vadd.f32 %v1721, %v1809
        %v1811 = vpop.f32.mrb[0].mxu0
        %v1812 = vpop.f32.mrb[0].mxu0
        %v1813 = vadd.f32 %v1724, %v1812
        %v1814 = vpop.f32.mrb[0].mxu0
        %1815 = vmatprep.mubr.bf16.mxu0 0
        %1816 = vmatmul.mubr.bf16.gmra.mrb[0].mxu0 %v481
        %v1817 = vpop.f32.mrb[0].mxu0
        %v1818 = vadd.f32 %v1729, %v1817
        %v1819 = vpop.f32.mrb[0].mxu0
        %v1820 = vpop.f32.mrb[0].mxu0
        %v1821 = vadd.f32 %v1732, %v1820
        %v1822 = vpop.f32.mrb[0].mxu0
        %1823 = vmatprep.mubr.bf16.mxu0 0
        %1824 = vmatmul.mubr.bf16.gmra.mrb[0].mxu0 %v833
        %v1825 = vpop.f32.mrb[0].mxu0
        %v1826 = vadd.f32 %v1737, %v1825
        %v1827 = vpop.f32.mrb[0].mxu0
        %v1828 = vpop.f32.mrb[0].mxu0
        %v1829 = vadd.f32 %v1740, %v1828
        %v1830 = vpop.f32.mrb[0].mxu0
        %1831 = vmatprep.mubr.bf16.mxu0 0
        %1832 = vmatmul.mubr.bf16.gmra.mrb[0].mxu0 %v734
        %v1833 = vpop.f32.mrb[0].mxu0
        %v1834 = vadd.f32 %v1745, %v1833
        %v1835 = vpop.f32.mrb[0].mxu0
        %v1836 = vpop.f32.mrb[0].mxu0
        %v1837 = vadd.f32 %v1748, %v1836
        %v1838 = vpop.f32.mrb[0].mxu0
        %1839 = vmatprep.mubr.bf16.mxu0 0
        %1840 = vmatmul.mubr.bf16.gmra.mrb[0].mxu0 %v752
        %v1841 = vpop.f32.mrb[0].mxu0
        %v1842 = vadd.f32 %v1753, %v1841
        %v1843 = vpop.f32.mrb[0].mxu0
        %v1844 = vpop.f32.mrb[0].mxu0
        %v1845 = vadd.f32 %v1756, %v1844
        %v1846 = vpop.f32.mrb[0].mxu0
        %1847 = vmatprep.mubr.bf16.mxu0 0
        %1848 = vmatmul.mubr.bf16.gmra.mrb[0].mxu0 %v770
        %v1849 = vpop.f32.mrb[0].mxu0
        %v1850 = vadd.f32 %v1761, %v1849
        %v1851 = vpop.f32.mrb[0].mxu0
        %v1852 = vpop.f32.mrb[0].mxu0
        %v1853 = vadd.f32 %v1764, %v1852
        %v1854 = vpop.f32.mrb[0].mxu0
        %1855 = vdwg.mxu0
        %v1856 = vlaneseq
        %v1857 = vshrl.u32 %v1856, 7
        %v1858 = vadd.s32 %v1857, 8
        %v1859 = vadd.s32 %v1857, 16
        %v1860 = vadd.s32 %v1857, 24
        %v1861 = vadd.s32 %v1857, 32
        %v1862 = vadd.s32 %v1857, 40
        %v1863 = vadd.s32 %v1857, 48
        %v1864 = vadd.s32 %v1857, 56
        %v1865 = vadd.s32 %v1857, 64
        %v1866 = vadd.s32 %v1857, 72
        %v1867 = vadd.s32 %v1857, 80
        %v1868 = vadd.s32 %v1857, 88
        %v1869 = vadd.s32 %v1857, 96
        %v1870 = vadd.s32 %v1857, 104
        %vm1871 = vcmp.lt.s32.totalorder %v1857, 0
        %v1872 = vsub.s32 0, %v1857
        %v1873 = vsel %vm1871, %v1872, %v1857
        %v1874 = vshrl.u32 %v1873, 3
        %v1875 = vand.u32 %v1873, 7
        %v1876 = vsub.s32 0, %v1875
        %v1877 = vsel %vm1871, %v1876, %v1875
        %vm1878 = vcmp.lt.s32.totalorder %v1858, 0
        %v1879 = vsub.s32 0, %v1858
        %v1880 = vsel %vm1878, %v1879, %v1858
        %v1881 = vshrl.u32 %v1880, 3
        %v1882 = vand.u32 %v1880, 7
        %v1883 = vsub.s32 0, %v1882
        %v1884 = vsel %vm1878, %v1883, %v1882
        %vm1885 = vcmp.lt.s32.totalorder %v1859, 0
        %v1886 = vsub.s32 0, %v1859
        %v1887 = vsel %vm1885, %v1886, %v1859
        %v1888 = vshrl.u32 %v1887, 3
        %v1889 = vand.u32 %v1887, 7
        %v1890 = vsub.s32 0, %v1889
        %v1891 = vsel %vm1885, %v1890, %v1889
        %vm1892 = vcmp.lt.s32.totalorder %v1860, 0
        %v1893 = vsub.s32 0, %v1860
        %v1894 = vsel %vm1892, %v1893, %v1860
        %v1895 = vshrl.u32 %v1894, 3
        %v1896 = vand.u32 %v1894, 7
        %v1897 = vsub.s32 0, %v1896
        %v1898 = vsel %vm1892, %v1897, %v1896
        %vm1899 = vcmp.lt.s32.totalorder %v1861, 0
        %v1900 = vsub.s32 0, %v1861
        %v1901 = vsel %vm1899, %v1900, %v1861
        %v1902 = vshrl.u32 %v1901, 3
        %v1903 = vand.u32 %v1901, 7
        %v1904 = vsub.s32 0, %v1903
        %v1905 = vsel %vm1899, %v1904, %v1903
        %vm1906 = vcmp.lt.s32.totalorder %v1862, 0
        %v1907 = vsub.s32 0, %v1862
        %v1908 = vsel %vm1906, %v1907, %v1862
        %v1909 = vshrl.u32 %v1908, 3
        %v1910 = vand.u32 %v1908, 7
        %v1911 = vsub.s32 0, %v1910
        %v1912 = vsel %vm1906, %v1911, %v1910
        %vm1913 = vcmp.lt.s32.totalorder %v1863, 0
        %v1914 = vsub.s32 0, %v1863
        %v1915 = vsel %vm1913, %v1914, %v1863
        %v1916 = vshrl.u32 %v1915, 3
        %v1917 = vand.u32 %v1915, 7
        %v1918 = vsub.s32 0, %v1917
        %v1919 = vsel %vm1913, %v1918, %v1917
        %vm1920 = vcmp.lt.s32.totalorder %v1864, 0
        %v1921 = vsub.s32 0, %v1864
        %v1922 = vsel %vm1920, %v1921, %v1864
        %v1923 = vshrl.u32 %v1922, 3
        %v1924 = vand.u32 %v1922, 7
        %v1925 = vsub.s32 0, %v1924
        %v1926 = vsel %vm1920, %v1925, %v1924
        %vm1927 = vcmp.lt.s32.totalorder %v1865, 0
        %v1928 = vsub.s32 0, %v1865
        %v1929 = vsel %vm1927, %v1928, %v1865
        %v1930 = vshrl.u32 %v1929, 3
        %v1931 = vand.u32 %v1929, 7
        %v1932 = vsub.s32 0, %v1931
        %v1933 = vsel %vm1927, %v1932, %v1931
        %vm1934 = vcmp.lt.s32.totalorder %v1866, 0
        %v1935 = vsub.s32 0, %v1866
        %v1936 = vsel %vm1934, %v1935, %v1866
        %v1937 = vshrl.u32 %v1936, 3
        %v1938 = vand.u32 %v1936, 7
        %v1939 = vsub.s32 0, %v1938
        %v1940 = vsel %vm1934, %v1939, %v1938
        %vm1941 = vcmp.lt.s32.totalorder %v1867, 0
        %v1942 = vsub.s32 0, %v1867
        %v1943 = vsel %vm1941, %v1942, %v1867
        %v1944 = vshrl.u32 %v1943, 3
        %v1945 = vand.u32 %v1943, 7
        %v1946 = vsub.s32 0, %v1945
        %v1947 = vsel %vm1941, %v1946, %v1945
        %vm1948 = vcmp.lt.s32.totalorder %v1868, 0
        %v1949 = vsub.s32 0, %v1868
        %v1950 = vsel %vm1948, %v1949, %v1868
        %v1951 = vshrl.u32 %v1950, 3
        %v1952 = vand.u32 %v1950, 7
        %v1953 = vsub.s32 0, %v1952
        %v1954 = vsel %vm1948, %v1953, %v1952
        %vm1955 = vcmp.lt.s32.totalorder %v1869, 0
        %v1956 = vsub.s32 0, %v1869
        %v1957 = vsel %vm1955, %v1956, %v1869
        %v1958 = vshrl.u32 %v1957, 3
        %v1959 = vand.u32 %v1957, 7
        %v1960 = vsub.s32 0, %v1959
        %v1961 = vsel %vm1955, %v1960, %v1959
        %vm1962 = vcmp.lt.s32.totalorder %v1870, 0
        %v1963 = vsub.s32 0, %v1870
        %v1964 = vsel %vm1962, %v1963, %v1870
        %v1965 = vshrl.u32 %v1964, 3
        %v1966 = vand.u32 %v1964, 7
        %v1967 = vsub.s32 0, %v1966
        %v1968 = vsel %vm1962, %v1967, %v1966
        %vm1969 = vcmp.ne.s32.totalorder %v1877, 0
        %vm1970 = vcmp.ne.s32.totalorder %v1884, 0
        %vm1971 = vcmp.ne.s32.totalorder %v1891, 0
        %vm1972 = vcmp.ne.s32.totalorder %v1898, 0
        %vm1973 = vcmp.ne.s32.totalorder %v1905, 0
        %vm1974 = vcmp.ne.s32.totalorder %v1912, 0
        %vm1975 = vcmp.ne.s32.totalorder %v1919, 0
        %vm1976 = vcmp.ne.s32.totalorder %v1926, 0
        %vm1977 = vcmp.ne.s32.totalorder %v1933, 0
        %vm1978 = vcmp.ne.s32.totalorder %v1940, 0
        %vm1979 = vcmp.ne.s32.totalorder %v1947, 0
        %vm1980 = vcmp.ne.s32.totalorder %v1954, 0
        %vm1981 = vcmp.ne.s32.totalorder %v1961, 0
        %vm1982 = vcmp.ne.s32.totalorder %v1968, 0
        %vm1983 = vcmp.lt.s32.totalorder %v1877, 0
        %vm1984 = vcmp.lt.s32.totalorder %v1884, 0
        %vm1985 = vcmp.lt.s32.totalorder %v1891, 0
        %vm1986 = vcmp.lt.s32.totalorder %v1898, 0
        %vm1987 = vcmp.lt.s32.totalorder %v1905, 0
        %vm1988 = vcmp.lt.s32.totalorder %v1912, 0
        %vm1989 = vcmp.lt.s32.totalorder %v1919, 0
        %vm1990 = vcmp.lt.s32.totalorder %v1926, 0
        %vm1991 = vcmp.lt.s32.totalorder %v1933, 0
        %vm1992 = vcmp.lt.s32.totalorder %v1940, 0
        %vm1993 = vcmp.lt.s32.totalorder %v1947, 0
        %vm1994 = vcmp.lt.s32.totalorder %v1954, 0
        %vm1995 = vcmp.lt.s32.totalorder %v1961, 0
        %vm1996 = vcmp.lt.s32.totalorder %v1968, 0
        %vm1997 = vmand %vm1983, %vm1969
        %vm1998 = vmand %vm1984, %vm1970
        %vm1999 = vmand %vm1985, %vm1971
        %vm2000 = vmand %vm1986, %vm1972
        %vm2001 = vmand %vm1987, %vm1973
        %vm2002 = vmand %vm1988, %vm1974
        %vm2003 = vmand %vm1989, %vm1975
        %vm2004 = vmand %vm1990, %vm1976
        %vm2005 = vmand %vm1991, %vm1977
        %vm2006 = vmand %vm1992, %vm1978
        %vm2007 = vmand %vm1993, %vm1979
        %vm2008 = vmand %vm1994, %vm1980
        %vm2009 = vmand %vm1995, %vm1981
        %vm2010 = vmand %vm1996, %vm1982
        %v2011 = vadd.s32 %v1877, 8
        %v2012 = vadd.s32 %v1884, 8
        %v2013 = vadd.s32 %v1891, 8
        %v2014 = vadd.s32 %v1898, 8
        %v2015 = vadd.s32 %v1905, 8
        %v2016 = vadd.s32 %v1912, 8
        %v2017 = vadd.s32 %v1919, 8
        %v2018 = vadd.s32 %v1926, 8
        %v2019 = vadd.s32 %v1933, 8
        %v2020 = vadd.s32 %v1940, 8
        %v2021 = vadd.s32 %v1947, 8
        %v2022 = vadd.s32 %v1954, 8
        %v2023 = vadd.s32 %v1961, 8
        %v2024 = vadd.s32 %v1968, 8
        %v2025 = vsel %vm1997, %v2011, %v1877
        %v2026 = vsel %vm1998, %v2012, %v1884
        %v2027 = vsel %vm1999, %v2013, %v1891
        %v2028 = vsel %vm2000, %v2014, %v1898
        %v2029 = vsel %vm2001, %v2015, %v1905
        %v2030 = vsel %vm2002, %v2016, %v1912
        %v2031 = vsel %vm2003, %v2017, %v1919
        %v2032 = vsel %vm2004, %v2018, %v1926
        %v2033 = vsel %vm2005, %v2019, %v1933
        %v2034 = vsel %vm2006, %v2020, %v1940
        %v2035 = vsel %vm2007, %v2021, %v1947
        %v2036 = vsel %vm2008, %v2022, %v1954
        %v2037 = vsel %vm2009, %v2023, %v1961
        %v2038 = vsel %vm2010, %v2024, %v1968
        %vm2039 = vcmp.lt.s32.totalorder %v2025, 7
        %vm2040 = vcmp.lt.s32.totalorder %v2026, 7
        %vm2041 = vcmp.lt.s32.totalorder %v2027, 7
        %vm2042 = vcmp.lt.s32.totalorder %v2028, 7
        %vm2043 = vcmp.lt.s32.totalorder %v2029, 7
        %vm2044 = vcmp.lt.s32.totalorder %v2030, 7
        %vm2045 = vcmp.lt.s32.totalorder %v2031, 7
        %vm2046 = vcmp.lt.s32.totalorder %v2032, 7
        %vm2047 = vcmp.lt.s32.totalorder %v2033, 7
        %vm2048 = vcmp.lt.s32.totalorder %v2034, 7
        %vm2049 = vcmp.lt.s32.totalorder %v2035, 7
        %vm2050 = vcmp.lt.s32.totalorder %v2036, 7
        %vm2051 = vcmp.lt.s32.totalorder %v2037, 7
        %vm2052 = vcmp.lt.s32.totalorder %v2038, 7
        %v2053 = vsel %vm2039, %v1802, 0.0
        %v2054 = vsel %vm2040, %v1805, 0.0
        %v2055 = vsel %vm2041, %v1810, 0.0
        %v2056 = vsel %vm2042, %v1813, 0.0
        %v2057 = vsel %vm2043, %v1818, 0.0
        %v2058 = vsel %vm2044, %v1821, 0.0
        %v2059 = vsel %vm2045, %v1826, 0.0
        %v2060 = vsel %vm2046, %v1829, 0.0
        %v2061 = vsel %vm2047, %v1834, 0.0
        %v2062 = vsel %vm2048, %v1837, 0.0
        %v2063 = vsel %vm2049, %v1842, 0.0
        %v2064 = vsel %vm2050, %v1845, 0.0
        %v2065 = vsel %vm2051, %v1850, 0.0
        %v2066 = vsel %vm2052, %v1853, 0.0
        %v2067 = vadd.f32 %v2053, %v2054
        %v2068 = vadd.f32 %v2067, %v2055
        %v2069 = vadd.f32 %v2068, %v2056
        %v2070 = vadd.f32 %v2069, %v2057
        %v2071 = vadd.f32 %v2070, %v2058
        %v2072 = vadd.f32 %v2071, %v2059
        %v2073 = vadd.f32 %v2072, %v2060
        %v2074 = vadd.f32 %v2073, %v2061
        %v2075 = vadd.f32 %v2074, %v2062
        %v2076 = vadd.f32 %v2075, %v2063
        %v2077 = vadd.f32 %v2076, %v2064
        %v2078 = vadd.f32 %v2077, %v2065
        %v2079 = vadd.f32 %v2078, %v2066
        %v2080 = vrot.slane %v2079, 4
        %v2081 = vadd.f32 %v2079, %v2080
        %v2082 = vrot.slane %v2081, 2
        %v2083 = vadd.f32 %v2081, %v2082
        %v2084 = vrot.slane %v2083, 1
        %v2085 = vadd.f32 %v2083, %v2084
        %v2086 = vmul.f32 %v2085, 0.010204081
        %v2087 = vsub.f32 %v1802, %v2086
        %v2088 = vsub.f32 %v1805, %v2086
        %v2089 = vsub.f32 %v1810, %v2086
        %v2090 = vsub.f32 %v1813, %v2086
        %v2091 = vsub.f32 %v1818, %v2086
        %v2092 = vsub.f32 %v1821, %v2086
        %v2093 = vsub.f32 %v1826, %v2086
        %v2094 = vsub.f32 %v1829, %v2086
        %v2095 = vsub.f32 %v1834, %v2086
        %v2096 = vsub.f32 %v1837, %v2086
        %v2097 = vsub.f32 %v1842, %v2086
        %v2098 = vsub.f32 %v1845, %v2086
        %v2099 = vsub.f32 %v1850, %v2086
        %v2100 = vsub.f32 %v1853, %v2086
        %v2101 = vsel %vm2039, %v2087, 0.0
        %v2102 = vsel %vm2040, %v2088, 0.0
        %v2103 = vsel %vm2041, %v2089, 0.0
        %v2104 = vsel %vm2042, %v2090, 0.0
        %v2105 = vsel %vm2043, %v2091, 0.0
        %v2106 = vsel %vm2044, %v2092, 0.0
        %v2107 = vsel %vm2045, %v2093, 0.0
        %v2108 = vsel %vm2046, %v2094, 0.0
        %v2109 = vsel %vm2047, %v2095, 0.0
        %v2110 = vsel %vm2048, %v2096, 0.0
        %v2111 = vsel %vm2049, %v2097, 0.0
        %v2112 = vsel %vm2050, %v2098, 0.0
        %v2113 = vsel %vm2051, %v2099, 0.0
        %v2114 = vsel %vm2052, %v2100, 0.0
        %v2115 = vmul.f32 %v2101, %v2101
        %v2116 = vmul.f32 %v2102, %v2102
        %v2117 = vmul.f32 %v2103, %v2103
        %v2118 = vmul.f32 %v2104, %v2104
        %v2119 = vmul.f32 %v2105, %v2105
        %v2120 = vmul.f32 %v2106, %v2106
        %v2121 = vmul.f32 %v2107, %v2107
        %v2122 = vmul.f32 %v2108, %v2108
        %v2123 = vmul.f32 %v2109, %v2109
        %v2124 = vmul.f32 %v2110, %v2110
        %v2125 = vmul.f32 %v2111, %v2111
        %v2126 = vmul.f32 %v2112, %v2112
        %v2127 = vmul.f32 %v2113, %v2113
        %v2128 = vmul.f32 %v2114, %v2114
        %v2129 = vadd.f32 %v2115, %v2116
        %v2130 = vadd.f32 %v2129, %v2117
        %v2131 = vadd.f32 %v2130, %v2118
        %v2132 = vadd.f32 %v2131, %v2119
        %v2133 = vadd.f32 %v2132, %v2120
        %v2134 = vadd.f32 %v2133, %v2121
        %v2135 = vadd.f32 %v2134, %v2122
        %v2136 = vadd.f32 %v2135, %v2123
        %v2137 = vadd.f32 %v2136, %v2124
        %v2138 = vadd.f32 %v2137, %v2125
        %v2139 = vadd.f32 %v2138, %v2126
        %v2140 = vadd.f32 %v2139, %v2127
        %v2141 = vadd.f32 %v2140, %v2128
        %v2142 = vrot.slane %v2141, 4
        %v2143 = vadd.f32 %v2141, %v2142
        %v2144 = vrot.slane %v2143, 2
        %v2145 = vadd.f32 %v2143, %v2144
        %v2146 = vrot.slane %v2145, 1
        %v2147 = vadd.f32 %v2145, %v2146
        %v2148 = vmul.f32 %v2147, 0.010204081
        %v2149 = vadd.f32 %v2148, 1e-05
        %v2150 = vrsqrt.pop %v2149
        %v2151 = vld [vmem:[%s236] sm:$0x1]
        %v2152 = vmul.f32 %v2151, %v2150
        %v2153 = vld [vmem:[%s239] sm:$0x1]
        %v2154 = vmul.f32 %v2086, %v2152
        %v2155 = vsub.f32 %v2153, %v2154
        %v2157 = vlaneseq
        %v2158 = vshrl.u32 %v2157, 7
        %v2159 = vsub.s32 0, %v2158
        %v2160 = vrot.slane %v2152, %v2159
        %v2162 = vmul.f32 %v1802, %v2160
        %v2163 = vmul.f32 %v1805, %v2160
        %v2164 = vmul.f32 %v1810, %v2160
        %v2165 = vmul.f32 %v1813, %v2160
        %v2166 = vmul.f32 %v1818, %v2160
        %v2167 = vmul.f32 %v1821, %v2160
        %v2168 = vmul.f32 %v1826, %v2160
        %v2169 = vmul.f32 %v1829, %v2160
        %v2170 = vmul.f32 %v1834, %v2160
        %v2171 = vmul.f32 %v1837, %v2160
        %v2172 = vmul.f32 %v1842, %v2160
        %v2173 = vmul.f32 %v1845, %v2160
        %v2174 = vmul.f32 %v1850, %v2160
        %v2175 = vmul.f32 %v1853, %v2160
        %v2177 = vlaneseq
        %v2178 = vshrl.u32 %v2177, 7
        %v2179 = vsub.s32 0, %v2178
        %v2180 = vrot.slane %v2155, %v2179
        %v2182 = vadd.f32 %v2162, %v2180
        %v2183 = vadd.f32 %v2163, %v2180
        %v2184 = vadd.f32 %v2164, %v2180
        %v2185 = vadd.f32 %v2165, %v2180
        %v2186 = vadd.f32 %v2166, %v2180
        %v2187 = vadd.f32 %v2167, %v2180
        %v2188 = vadd.f32 %v2168, %v2180
        %v2189 = vadd.f32 %v2169, %v2180
        %v2190 = vadd.f32 %v2170, %v2180
        %v2191 = vadd.f32 %v2171, %v2180
        %v2192 = vadd.f32 %v2172, %v2180
        %v2193 = vadd.f32 %v2173, %v2180
        %v2194 = vadd.f32 %v2174, %v2180
        %v2195 = vadd.f32 %v2175, %v2180
        %2196 = vst [vmem:[%s223] sm:$0xff] %v2182
        %2197 = vst [vmem:[%s223 + $0x8] sm:$0xff] %v2183
        %2198 = vst [vmem:[%s223 + $0x10] sm:$0xff] %v2184
        %2199 = vst [vmem:[%s223 + $0x18] sm:$0xff] %v2185
        %2200 = vst [vmem:[%s223 + $0x20] sm:$0xff] %v2186
        %2201 = vst [vmem:[%s223 + $0x28] sm:$0xff] %v2187
        %2202 = vst [vmem:[%s223 + $0x30] sm:$0xff] %v2188
        %2203 = vst [vmem:[%s223 + $0x38] sm:$0xff] %v2189
        %2204 = vst [vmem:[%s223 + $0x40] sm:$0xff] %v2190
        %2205 = vst [vmem:[%s223 + $0x48] sm:$0xff] %v2191
        %2206 = vst [vmem:[%s223 + $0x50] sm:$0xff] %v2192
        %2207 = vst [vmem:[%s223 + $0x58] sm:$0xff] %v2193
        %2208 = vst [vmem:[%s223 + $0x60] sm:$0xff] %v2194
        %2209 = vst [vmem:[%s223 + $0x68] sm:$0xff] %v2195
        %s2210 = sand.u32 %s127, 1
        %s2211 = sand.u32 %s127, 1
        %s2212 = smul.addr %s2211, 112
        %s2213 = scalar_lea.vmem [#allocation2], %s2212
        // Predicated region
        $region37: #{conv2d_groups_batchnorm.1} parent=35 // pred_check
          %p2214 = pneg %p137
        $region38: #{conv2d_groups_batchnorm.1} parent=35 // pred_check_branch
          %2216 = sbr.rel (%p2214) target = $region40
        $region39: #{conv2d_groups_batchnorm.1} parent=35 // pred_region
          %s2217 = smul.addr %s15, 8
          %s2218 = scalar_lea.vmem %s4, %s2217
          // Predicated region
          $region41: #{conv2d_groups_batchnorm.1} parent=39 // pred_check
            _
          $region42: #{conv2d_groups_batchnorm.1} parent=39 // pred_check_branch
            %2220 = sbr.rel (0) target = $region44
          $region43: #{conv2d_groups_batchnorm.1} parent=39 // pred_region
            // Predicated region
            $region45: #{conv2d_groups_batchnorm.1} parent=43 // pred_check
              _
            $region46: #{conv2d_groups_batchnorm.1} parent=43 // pred_check_branch
              %2222 = sbr.rel (0) target = $region48
            $region47: #{conv2d_groups_batchnorm.1} parent=43 // pred_region
              // Predicated region
              $region60: #{conv2d_groups_batchnorm.1} parent=47 // pred_check
                _
              $region61: #{conv2d_groups_batchnorm.1} parent=47 // pred_check_branch
                %2263 = sbr.rel (0) target = $region63
              $region62: #{conv2d_groups_batchnorm.1} parent=47 // pred_region
                loop: start=0, step=1, limit=1
                $region64: #{conv2d_groups_batchnorm.1} parent=62 // loop_pre_header
                  _
                $region65: #{conv2d_groups_batchnorm.1} parent=62 // loop_header
                  %s2265 = sphi 0, %s2269
                  %p2266 = scmp.ge.s32.totalorder %s2265, 1
                  %s2270 = sphi %s2213, %s2213
                  %s2271 = sphi %s2218, %s2218
                $region66: #{conv2d_groups_batchnorm.1} parent=62 // loop_header_branch
                  %2268 = sbr.rel (%p2266) target = $region70
                $region67: #{conv2d_groups_batchnorm.1} parent=62 // loop_body
                  %v2272 = vld [vmem:[%s2270] sm:$0xff]
                  %2273 = vst [vmem:[%s2271] sm:$0xff] %v2272
                  %v2274 = vld [vmem:[%s2270 + $0x8] sm:$0xff]
                  %2275 = vst [vmem:[%s2271 + $0x20] sm:$0xff] %v2274
                  %v2276 = vld [vmem:[%s2270 + $0x10] sm:$0xff]
                  %2277 = vst [vmem:[%s2271 + $0x40] sm:$0xff] %v2276
                  %v2278 = vld [vmem:[%s2270 + $0x18] sm:$0xff]
                  %2279 = vst [vmem:[%s2271 + $0x60] sm:$0xff] %v2278
                  %v2280 = vld [vmem:[%s2270 + $0x20] sm:$0xff]
                  %2281 = vst [vmem:[%s2271 + $0x80] sm:$0xff] %v2280
                  %v2282 = vld [vmem:[%s2270 + $0x28] sm:$0xff]
                  %2283 = vst [vmem:[%s2271 + $0xa0] sm:$0xff] %v2282
                  %v2284 = vld [vmem:[%s2270 + $0x30] sm:$0xff]
                  %2285 = vst [vmem:[%s2271 + $0xc0] sm:$0xff] %v2284
                  %v2286 = vld [vmem:[%s2270 + $0x38] sm:$0xff]
                  %2287 = vst [vmem:[%s2271 + $0xe0] sm:$0xff] %v2286
                  %v2288 = vld [vmem:[%s2270 + $0x40] sm:$0xff]
                  %2289 = vst [vmem:[%s2271 + $0x100] sm:$0xff] %v2288
                  %v2290 = vld [vmem:[%s2270 + $0x48] sm:$0xff]
                  %2291 = vst [vmem:[%s2271 + $0x120] sm:$0xff] %v2290
                  %v2292 = vld [vmem:[%s2270 + $0x50] sm:$0xff]
                  %2293 = vst [vmem:[%s2271 + $0x140] sm:$0xff] %v2292
                  %v2294 = vld [vmem:[%s2270 + $0x58] sm:$0xff]
                  %2295 = vst [vmem:[%s2271 + $0x160] sm:$0xff] %v2294
                  %v2296 = vld [vmem:[%s2270 + $0x60] sm:$0xff]
                  %2297 = vst [vmem:[%s2271 + $0x180] sm:$0xff] %v2296
                  %v2298 = vld [vmem:[%s2270 + $0x68] sm:$0xff]
                  %2299 = vst [vmem:[%s2271 + $0x1a0] sm:$0xff] %v2298
                $region68: #{conv2d_groups_batchnorm.1} parent=62 // loop_footer
                  %s2269 = sadd.s32 1, %s2265
                $region69: #{conv2d_groups_batchnorm.1} parent=62 // loop_footer_branch
                  %2264 = sbr.rel target = $region65
                $region70: #{conv2d_groups_batchnorm.1} parent=62 // loop_exit
                  _
              $region63: #{conv2d_groups_batchnorm.1} parent=47 // pred_fallthru
                _
              // Predicated region
              $region71: #{conv2d_groups_batchnorm.1} parent=47 // pred_check
                _
              $region72: #{conv2d_groups_batchnorm.1} parent=47 // pred_check_branch
                %2301 = sbr.rel target = $region74
              $region73: #{conv2d_groups_batchnorm.1} parent=47 // pred_region
                _
              $region74: #{conv2d_groups_batchnorm.1} parent=47 // pred_fallthru
                _
            $region48: #{conv2d_groups_batchnorm.1} parent=43 // pred_fallthru
              _
            // Predicated region
            $region49: #{conv2d_groups_batchnorm.1} parent=43 // pred_check
              _
            $region50: #{conv2d_groups_batchnorm.1} parent=43 // pred_check_branch
              %2224 = sbr.rel target = $region52
            $region51: #{conv2d_groups_batchnorm.1} parent=43 // pred_region
              loop: start=0, step=1, limit=1
              $region53: #{conv2d_groups_batchnorm.1} parent=51 // loop_pre_header
                _
              $region54: #{conv2d_groups_batchnorm.1} parent=51 // loop_header
                %s2227 = sphi 0, %s2231
                %p2228 = scmp.ge.s32.totalorder %s2227, 1
                %s2232 = sphi %s2213, %s2213
                %s2233 = sphi %s2218, %s2218
              $region55: #{conv2d_groups_batchnorm.1} parent=51 // loop_header_branch
                %2230 = sbr.rel (%p2228) target = $region59
              $region56: #{conv2d_groups_batchnorm.1} parent=51 // loop_body
                %v2234 = vld [vmem:[%s2232] sm:$0xff]
                %2235 = vst [vmem:[%s2233] sm:$0xff] %v2234
                %v2236 = vld [vmem:[%s2232 + $0x8] sm:$0xff]
                %2237 = vst [vmem:[%s2233 + $0x20] sm:$0xff] %v2236
                %v2238 = vld [vmem:[%s2232 + $0x10] sm:$0xff]
                %2239 = vst [vmem:[%s2233 + $0x40] sm:$0xff] %v2238
                %v2240 = vld [vmem:[%s2232 + $0x18] sm:$0xff]
                %2241 = vst [vmem:[%s2233 + $0x60] sm:$0xff] %v2240
                %v2242 = vld [vmem:[%s2232 + $0x20] sm:$0xff]
                %2243 = vst [vmem:[%s2233 + $0x80] sm:$0xff] %v2242
                %v2244 = vld [vmem:[%s2232 + $0x28] sm:$0xff]
                %2245 = vst [vmem:[%s2233 + $0xa0] sm:$0xff] %v2244
                %v2246 = vld [vmem:[%s2232 + $0x30] sm:$0xff]
                %2247 = vst [vmem:[%s2233 + $0xc0] sm:$0xff] %v2246
                %v2248 = vld [vmem:[%s2232 + $0x38] sm:$0xff]
                %2249 = vst [vmem:[%s2233 + $0xe0] sm:$0xff] %v2248
                %v2250 = vld [vmem:[%s2232 + $0x40] sm:$0xff]
                %2251 = vst [vmem:[%s2233 + $0x100] sm:$0xff] %v2250
                %v2252 = vld [vmem:[%s2232 + $0x48] sm:$0xff]
                %2253 = vst [vmem:[%s2233 + $0x120] sm:$0xff] %v2252
                %v2254 = vld [vmem:[%s2232 + $0x50] sm:$0xff]
                %2255 = vst [vmem:[%s2233 + $0x140] sm:$0xff] %v2254
                %v2256 = vld [vmem:[%s2232 + $0x58] sm:$0xff]
                %2257 = vst [vmem:[%s2233 + $0x160] sm:$0xff] %v2256
                %v2258 = vld [vmem:[%s2232 + $0x60] sm:$0xff]
                %2259 = vst [vmem:[%s2233 + $0x180] sm:$0xff] %v2258
                %v2260 = vld [vmem:[%s2232 + $0x68] sm:$0xff]
                %2261 = vst [vmem:[%s2233 + $0x1a0] sm:$0xff] %v2260
              $region57: #{conv2d_groups_batchnorm.1} parent=51 // loop_footer
                %s2231 = sadd.s32 1, %s2227
              $region58: #{conv2d_groups_batchnorm.1} parent=51 // loop_footer_branch
                %2226 = sbr.rel target = $region54
              $region59: #{conv2d_groups_batchnorm.1} parent=51 // loop_exit
                _
            $region52: #{conv2d_groups_batchnorm.1} parent=43 // pred_fallthru
              _
          $region44: #{conv2d_groups_batchnorm.1} parent=39 // pred_fallthru
            _
          %2302 = vnop
        $region40: #{conv2d_groups_batchnorm.1} parent=35 // pred_fallthru
          _
      $region36: #{conv2d_groups_batchnorm.1} parent=5 // pred_fallthru
        _
      %p2303 = scmp.le.s32.totalorder 2, %s10
      // Predicated region
      $region75: #{conv2d_groups_batchnorm.1} parent=5 // pred_check
        %p2304 = pneg %p2303
      $region76: #{conv2d_groups_batchnorm.1} parent=5 // pred_check_branch
        %2306 = sbr.rel (%p2304) target = $region78
      $region77: #{conv2d_groups_batchnorm.1} parent=5 // pred_region
        %s2307 = ssub.s32 %s10, 2
        // Predicated region
        $region79: #{conv2d_groups_batchnorm.1} parent=77 // pred_check
          %p2308 = pneg %p143
        $region80: #{conv2d_groups_batchnorm.1} parent=77 // pred_check_branch
          %2310 = sbr.rel (%p2308) target = $region82
        $region81: #{conv2d_groups_batchnorm.1} parent=77 // pred_region
          %s2311 = sand.u32 %s128, 1
          %s2312 = sand.u32 %s128, 1
          %s2313 = smul.addr %s2312, 112
          %s2314 = scalar_lea.vmem [#allocation2], %s2313
        $region82: #{conv2d_groups_batchnorm.1} parent=77 // pred_fallthru
          _
      $region78: #{conv2d_groups_batchnorm.1} parent=5 // pred_fallthru
        _
    $region6: #{conv2d_groups_batchnorm.1} parent=1 // loop_footer
      %s14 = sadd.s32 1, %s10
    $region7: #{conv2d_groups_batchnorm.1} parent=1 // loop_footer_branch
      %9 = sbr.rel target = $region3
    $region8: #{conv2d_groups_batchnorm.1} parent=1 // loop_exit
      _

</llo_original>
